<compile_context>
chip_gen: v7x
topology: tpu7x:2x2x1
jax: 0.10.0
libtpu: 0.0.40
codegen_flags: <defaults>
</compile_context>

<pallas_src>
import jax
import jax.numpy as jnp
from jax.experimental import pallas as pl
from jax.experimental.pallas import tpu as pltpu


def _predictor_kernel(x1_ref, x2_ref, w1_ref, b1_ref, w2_ref, b2_ref, o_ref):
    # Cast the streamed f32 activation tiles to bf16 right before the MXU dots
    # (f32 accumulation via preferred_element_type; all elementwise math f32).
    x1 = x1_ref[...].astype(jnp.bfloat16)
    x2 = x2_ref[...].astype(jnp.bfloat16)

    # ---- Layer 1: concat folded into two MXU matmuls on one accumulator ----
    # cat([x1, x2], -1) @ W1 == x1 @ W1[:D] + x2 @ W1[D:]
    # W1 arrives as (2, D, H); leading-index slices are boundary-safe.
    h = jnp.dot(x1, w1_ref[0], preferred_element_type=jnp.float32)
    h += jnp.dot(x2, w1_ref[1], preferred_element_type=jnp.float32)
    h += b1_ref[...]                 # f32 bias, broadcast over the batch tile
    h = jnp.maximum(h, 0.0)          # ReLU; Dropout (eval mode) == identity

    # ---- Layer 2 (output_dim == 1): VPU multiply + lane reduce, f32 ----
    logits = jnp.sum(h * w2_ref[...], axis=-1, keepdims=True) + b2_ref[0, 0]

    # ---- Sigmoid (EUP) ----
    o_ref[...] = jax.nn.sigmoid(logits).astype(o_ref.dtype)


def predictor_forward(x1, x2, w1, b1, w2, b2, *, block_b=1024):
    """x1, x2: (B, D) each.  w1: (2D, H), b1: (H,), w2: (H, 1), b2: (1,)."""
    B, D = x1.shape
    H = w1.shape[1]
    O = w2.shape[1]
    assert x2.shape == (B, D)
    assert w1.shape == (2 * D, H) and b1.shape == (H,)
    assert w2.shape == (H, O) and b2.shape == (O,)
    assert O == 1, "kernel is specialized to the module default output_dim=1"

    # Streamed activations are passed through untouched (no wrapper cast/pad
    # HBM passes).  Weight prep is tiny and one-time:
    #   W1 -> bf16, reshaped (2D, H) -> (2, D, H) for boundary-safe half-selects.
    w1_3d = w1.astype(jnp.bfloat16).reshape(2, D, H)
    b1_2d = b1.reshape(1, H).astype(jnp.float32)
    w2_row = w2.reshape(1, H).astype(jnp.float32)      # (H, 1) -> (1, H) row
    b2_smem = b2.reshape(1, 1).astype(jnp.float32)     # scalar via SMEM

    # Batch tile: full batch if it fits in one block, otherwise a multiple of
    # 16 sublanes.  A ragged last tile (B % tb != 0) is handled by the
    # pipeline's bounded stores; no wrapper-side padding.
    if B <= block_b:
        tb = B
    else:
        tb = max(16, (block_b // 16) * 16)
    grid_b = pl.cdiv(B, tb)

    def run(single_buffer_resident):
        resident_kwargs = (
            dict(pipeline_mode=pl.Buffered(1)) if single_buffer_resident else {}
        )
        in_specs = [
            pl.BlockSpec((tb, D), lambda i: (i, 0)),          # x1 tile (f32), streamed
            pl.BlockSpec((tb, D), lambda i: (i, 0)),          # x2 tile (f32), streamed
            pl.BlockSpec((2, D, H), lambda i: (0, 0, 0),      # W1 (bf16), VMEM-resident
                         **resident_kwargs),
            pl.BlockSpec((1, H), lambda i: (0, 0),            # b1 (f32), VMEM-resident
                         **resident_kwargs),
            pl.BlockSpec((1, H), lambda i: (0, 0),            # W2 row (f32), resident
                         **resident_kwargs),
            pl.BlockSpec(memory_space=pltpu.MemorySpace.SMEM),  # b2 scalar
        ]
        return pl.pallas_call(
            _predictor_kernel,
            out_shape=jax.ShapeDtypeStruct((B, O), jnp.float32),
            grid=(grid_b,),
            in_specs=in_specs,
            out_specs=pl.BlockSpec((tb, O), lambda i: (i, 0)),
            compiler_params=pltpu.CompilerParams(
                dimension_semantics=("parallel",),
                vmem_limit_bytes=48 * 1024 * 1024,
            ),
        )(x1, x2, w1_3d, b1_2d, w2_row, b2_smem)

    try:
        return run(True)
    except Exception:
        # Fallback if this jax build rejects Buffered(1) single-buffering for
        # the resident weights (costs ~1.5 MiB extra VMEM, otherwise identical).
        return run(False)


def reference_forward_f32(x1, x2, w1, b1, w2, b2):
    """Pure float32 reference matching the PyTorch module (eval mode)."""
    combined = jnp.concatenate([x1, x2], axis=-1)
    h = jnp.maximum(combined @ w1 + b1, 0.0)
    return jax.nn.sigmoid(h @ w2 + b2)


def reference_forward_mixed(x1, x2, w1, b1, w2, b2):
    """Reference mirroring the kernel's dtype strategy (bf16 MXU operands, f32 math)."""
    combined = jnp.concatenate([x1, x2], axis=-1).astype(jnp.bfloat16)
    h = jnp.dot(combined, w1.astype(jnp.bfloat16),
                preferred_element_type=jnp.float32) + b1
    h = jnp.maximum(h, 0.0)
    logits = jnp.sum(h * w2.reshape(1, -1), axis=-1, keepdims=True) + b2
    return jax.nn.sigmoid(logits)


if __name__ == "__main__":
    # Small shapes consistent with the module's structure: each fused embedding
    # has dim D (input_dim = 2*D), hidden H, output 1.
    B, D, H, O = 512, 256, 256, 1

    key = jax.random.PRNGKey(0)
    k1, k2, k3, k4, k5, k6 = jax.random.split(key, 6)

    x1 = jax.random.normal(k1, (B, D), dtype=jnp.float32)
    x2 = jax.random.normal(k2, (B, D), dtype=jnp.float32)

    # Deterministic parameter init (uniform, PyTorch-Linear-like scale).
    lim1 = 1.0 / jnp.sqrt(2.0 * D)
    lim2 = 1.0 / jnp.sqrt(float(H))
    w1 = jax.random.uniform(k3, (2 * D, H), minval=-lim1, maxval=lim1, dtype=jnp.float32)
    b1 = jax.random.uniform(k4, (H,), minval=-lim1, maxval=lim1, dtype=jnp.float32)
    w2 = jax.random.uniform(k5, (H, O), minval=-lim2, maxval=lim2, dtype=jnp.float32)
    b2 = jax.random.uniform(k6, (O,), minval=-lim2, maxval=lim2, dtype=jnp.float32)

    # block_b=128 -> grid=(4,) so the demo exercises the pipelined grid.
    # (Production default is block_b=1024; tiny tiles are demo-only.)
    out = predictor_forward(x1, x2, w1, b1, w2, b2, block_b=128)
    out = jax.block_until_ready(out)

    ref_mixed = reference_forward_mixed(x1, x2, w1, b1, w2, b2)
    ref_f32 = reference_forward_f32(x1, x2, w1, b1, w2, b2)

    assert out.shape == (B, O)
    assert jnp.allclose(out, ref_mixed, atol=2e-5, rtol=1e-4), \
        "mismatch vs dtype-matched reference"
    assert jnp.allclose(out, ref_f32, atol=2e-2), \
        "mismatch vs float32 reference (bf16 quantization bound exceeded)"

    print("KERNEL_OK")
</pallas_src>

<mosaic_0001>
module attributes {stable_mosaic.version = 11 : i64} {
  func.func @_predictor_kernel(%arg0: i32, %arg1: memref<128x256xf32, #tpu.memory_space<vmem>>, %arg2: memref<128x256xf32, #tpu.memory_space<vmem>>, %arg3: memref<2x256x256xbf16, #tpu.memory_space<vmem>>, %arg4: memref<1x256xf32, #tpu.memory_space<vmem>>, %arg5: memref<1x256xf32, #tpu.memory_space<vmem>>, %arg6: memref<1x1xf32, #tpu.memory_space<smem>>, %arg7: memref<128x1xf32, #tpu.memory_space<vmem>>) attributes {dimension_semantics = [#tpu.dimension_semantics<parallel>], iteration_bounds = array<i64: 4>, scalar_prefetch = 0 : i64, scratch_operands = 0 : i64, tpu.core_type = #tpu.core_type<tc>, window_params = [{transform_indices = @transform_0, window_bounds = array<i64: 128, 256>}, {transform_indices = @transform_1, window_bounds = array<i64: 128, 256>}, {pipeline_mode = #tpu.pipeline_mode<synchronous>, transform_indices = @transform_2, window_bounds = array<i64: 2, 256, 256>}, {pipeline_mode = #tpu.pipeline_mode<synchronous>, transform_indices = @transform_3, window_bounds = array<i64: 1, 256>}, {pipeline_mode = #tpu.pipeline_mode<synchronous>, transform_indices = @transform_4, window_bounds = array<i64: 1, 256>}, {transform_indices = @transform_5, window_bounds = array<i64: 1, 1>}, {transform_indices = @transform_6, window_bounds = array<i64: 128, 1>}]} {
    %c0 = arith.constant 0 : index
    %c0_0 = arith.constant 0 : index
    %0 = vector.load %arg1[%c0, %c0_0] : memref<128x256xf32, #tpu.memory_space<vmem>>, vector<128x256xf32>
    %1 = arith.truncf %0 : vector<128x256xf32> to vector<128x256xbf16>
    %c0_1 = arith.constant 0 : index
    %c0_2 = arith.constant 0 : index
    %2 = vector.load %arg2[%c0_1, %c0_2] : memref<128x256xf32, #tpu.memory_space<vmem>>, vector<128x256xf32>
    %3 = arith.truncf %2 : vector<128x256xf32> to vector<128x256xbf16>
    %c0_3 = arith.constant 0 : index
    %c0_4 = arith.constant 0 : index
    %c0_5 = arith.constant 0 : index
    %4 = vector.load %arg3[%c0_3, %c0_4, %c0_5] : memref<2x256x256xbf16, #tpu.memory_space<vmem>>, vector<1x256x256xbf16>
    %5 = vector.shape_cast %4 : vector<1x256x256xbf16> to vector<256x256xbf16>
    %cst = arith.constant dense<0.000000e+00> : vector<128x256xf32>
    %6 = tpu.matmul %1, %5, %cst {dimension_numbers = #tpu.dot_dimension_numbers<[1], [0], [0], [1], [0, 0, 1, 1], [], []>} : vector<128x256xbf16>, vector<256x256xbf16>, vector<128x256xf32> -> vector<128x256xf32>
    %c1 = arith.constant 1 : index
    %c0_6 = arith.constant 0 : index
    %c0_7 = arith.constant 0 : index
    %7 = vector.load %arg3[%c1, %c0_6, %c0_7] : memref<2x256x256xbf16, #tpu.memory_space<vmem>>, vector<1x256x256xbf16>
    %8 = vector.shape_cast %7 : vector<1x256x256xbf16> to vector<256x256xbf16>
    %cst_8 = arith.constant dense<0.000000e+00> : vector<128x256xf32>
    %9 = tpu.matmul %3, %8, %cst_8 {dimension_numbers = #tpu.dot_dimension_numbers<[1], [0], [0], [1], [0, 0, 1, 1], [], []>} : vector<128x256xbf16>, vector<256x256xbf16>, vector<128x256xf32> -> vector<128x256xf32>
    %10 = arith.addf %6, %9 : vector<128x256xf32>
    %c0_9 = arith.constant 0 : index
    %c0_10 = arith.constant 0 : index
    %11 = vector.load %arg4[%c0_9, %c0_10] : memref<1x256xf32, #tpu.memory_space<vmem>>, vector<1x256xf32>
    %12 = vector.broadcast %11 : vector<1x256xf32> to vector<128x256xf32>
    %13 = arith.addf %10, %12 : vector<128x256xf32>
    %cst_11 = arith.constant 0.000000e+00 : f32
    %14 = vector.broadcast %cst_11 : f32 to vector<128x256xf32>
    %15 = arith.maximumf %13, %14 : vector<128x256xf32>
    %c0_12 = arith.constant 0 : index
    %c0_13 = arith.constant 0 : index
    %16 = vector.load %arg5[%c0_12, %c0_13] : memref<1x256xf32, #tpu.memory_space<vmem>>, vector<1x256xf32>
    %17 = vector.broadcast %16 : vector<1x256xf32> to vector<128x256xf32>
    %18 = arith.mulf %15, %17 : vector<128x256xf32>
    %cst_14 = arith.constant dense<0.000000e+00> : vector<128xf32>
    %19 = vector.multi_reduction <add>, %18, %cst_14 [1] : vector<128x256xf32> to vector<128xf32>
    %20 = vector.shape_cast %19 : vector<128xf32> to vector<128x1xf32>
    %c0_15 = arith.constant 0 : index
    %c0_16 = arith.constant 0 : index
    %21 = memref.load %arg6[%c0_15, %c0_16] : memref<1x1xf32, #tpu.memory_space<smem>>
    %22 = vector.broadcast %21 : f32 to vector<128x1xf32>
    %23 = arith.addf %20, %22 : vector<128x1xf32>
    %24 = arith.negf %23 : vector<128x1xf32>
    %25 = math.exp %24 : vector<128x1xf32>
    %cst_17 = arith.constant 1.000000e+00 : f32
    %26 = vector.broadcast %cst_17 : f32 to vector<128x1xf32>
    %27 = arith.addf %26, %25 : vector<128x1xf32>
    %28 = arith.divf %26, %27 : vector<128x1xf32>
    %c0_18 = arith.constant 0 : index
    %c0_19 = arith.constant 0 : index
    %29 = vector.load %arg7[%c0_18, %c0_19] : memref<128x1xf32, #tpu.memory_space<vmem>>, vector<128x1xf32>
    tpu.vector_store %arg7[%c0_18, %c0_19], %28 {strides = array<i32>} : memref<128x1xf32, #tpu.memory_space<vmem>>, vector<128x1xf32>,
    return
  }
  func.func @transform_0(%arg0: i32) -> (i32, i32) {
    %c0_i32 = arith.constant 0 : i32
    %c0_i32_0 = arith.constant 0 : i32
    return %arg0, %c0_i32 : i32, i32
  }
  func.func @transform_1(%arg0: i32) -> (i32, i32) {
    %c0_i32 = arith.constant 0 : i32
    %c0_i32_0 = arith.constant 0 : i32
    return %arg0, %c0_i32 : i32, i32
  }
  func.func @transform_2(%arg0: i32) -> (i32, i32, i32) {
    %c0_i32 = arith.constant 0 : i32
    %c0_i32_0 = arith.constant 0 : i32
    %c0_i32_1 = arith.constant 0 : i32
    %c0_i32_2 = arith.constant 0 : i32
    return %c0_i32, %c0_i32_0, %c0_i32_1 : i32, i32, i32
  }
  func.func @transform_3(%arg0: i32) -> (i32, i32) {
    %c0_i32 = arith.constant 0 : i32
    %c0_i32_0 = arith.constant 0 : i32
    %c0_i32_1 = arith.constant 0 : i32
    return %c0_i32, %c0_i32_0 : i32, i32
  }
  func.func @transform_4(%arg0: i32) -> (i32, i32) {
    %c0_i32 = arith.constant 0 : i32
    %c0_i32_0 = arith.constant 0 : i32
    %c0_i32_1 = arith.constant 0 : i32
    return %c0_i32, %c0_i32_0 : i32, i32
  }
  func.func @transform_5(%arg0: i32) -> (i32, i32) {
    %c0_i32 = arith.constant 0 : i32
    %c0_i32_0 = arith.constant 0 : i32
    %c0_i32_1 = arith.constant 0 : i32
    return %c0_i32, %c0_i32_0 : i32, i32
  }
  func.func @transform_6(%arg0: i32) -> (i32, i32) {
    %c0_i32 = arith.constant 0 : i32
    %c0_i32_0 = arith.constant 0 : i32
    return %arg0, %c0_i32 : i32, i32
  }
}

module attributes {stable_mosaic.version = 11 : i64} {
  func.func @_predictor_kernel(%arg0: i32, %arg1: memref<128x256xf32, #tpu.memory_space<vmem>>, %arg2: memref<128x256xf32, #tpu.memory_space<vmem>>, %arg3: memref<2x256x256xbf16, #tpu.memory_space<vmem>>, %arg4: memref<1x256xf32, #tpu.memory_space<vmem>>, %arg5: memref<1x256xf32, #tpu.memory_space<vmem>>, %arg6: memref<1x1xf32, #tpu.memory_space<smem>>, %arg7: memref<128x1xf32, #tpu.memory_space<vmem>>) attributes {dimension_semantics = [#tpu.dimension_semantics<parallel>], iteration_bounds = array<i64: 4>, scalar_prefetch = 0 : i64, scratch_operands = 0 : i64, tpu.core_type = #tpu.core_type<tc>, window_params = [{transform_indices = @transform_0, window_bounds = array<i64: 128, 256>}, {transform_indices = @transform_1, window_bounds = array<i64: 128, 256>}, {pipeline_mode = #tpu.pipeline_mode<synchronous>, transform_indices = @transform_2, window_bounds = array<i64: 2, 256, 256>}, {pipeline_mode = #tpu.pipeline_mode<synchronous>, transform_indices = @transform_3, window_bounds = array<i64: 1, 256>}, {pipeline_mode = #tpu.pipeline_mode<synchronous>, transform_indices = @transform_4, window_bounds = array<i64: 1, 256>}, {transform_indices = @transform_5, window_bounds = array<i64: 1, 1>}, {transform_indices = @transform_6, window_bounds = array<i64: 128, 1>}]} {
    %c0 = arith.constant 0 : index
    %c0_0 = arith.constant 0 : index
    %0 = vector.load %arg1[%c0, %c0_0] : memref<128x256xf32, #tpu.memory_space<vmem>>, vector<128x256xf32>
    %1 = arith.truncf %0 : vector<128x256xf32> to vector<128x256xbf16>
    %c0_1 = arith.constant 0 : index
    %c0_2 = arith.constant 0 : index
    %2 = vector.load %arg2[%c0_1, %c0_2] : memref<128x256xf32, #tpu.memory_space<vmem>>, vector<128x256xf32>
    %3 = arith.truncf %2 : vector<128x256xf32> to vector<128x256xbf16>
    %c0_3 = arith.constant 0 : index
    %c0_4 = arith.constant 0 : index
    %c0_5 = arith.constant 0 : index
    %4 = vector.load %arg3[%c0_3, %c0_4, %c0_5] : memref<2x256x256xbf16, #tpu.memory_space<vmem>>, vector<1x256x256xbf16>
    %5 = vector.shape_cast %4 : vector<1x256x256xbf16> to vector<256x256xbf16>
    %cst = arith.constant dense<0.000000e+00> : vector<128x256xf32>
    %6 = tpu.matmul %1, %5, %cst {dimension_numbers = #tpu.dot_dimension_numbers<[1], [0], [0], [1], [0, 0, 1, 1], [], []>} : vector<128x256xbf16>, vector<256x256xbf16>, vector<128x256xf32> -> vector<128x256xf32>
    %c1 = arith.constant 1 : index
    %c0_6 = arith.constant 0 : index
    %c0_7 = arith.constant 0 : index
    %7 = vector.load %arg3[%c1, %c0_6, %c0_7] : memref<2x256x256xbf16, #tpu.memory_space<vmem>>, vector<1x256x256xbf16>
    %8 = vector.shape_cast %7 : vector<1x256x256xbf16> to vector<256x256xbf16>
    %cst_8 = arith.constant dense<0.000000e+00> : vector<128x256xf32>
    %9 = tpu.matmul %3, %8, %cst_8 {dimension_numbers = #tpu.dot_dimension_numbers<[1], [0], [0], [1], [0, 0, 1, 1], [], []>} : vector<128x256xbf16>, vector<256x256xbf16>, vector<128x256xf32> -> vector<128x256xf32>
    %10 = arith.addf %6, %9 : vector<128x256xf32>
    %c0_9 = arith.constant 0 : index
    %c0_10 = arith.constant 0 : index
    %11 = vector.load %arg4[%c0_9, %c0_10] : memref<1x256xf32, #tpu.memory_space<vmem>>, vector<1x256xf32>
    %12 = vector.broadcast %11 : vector<1x256xf32> to vector<128x256xf32>
    %13 = arith.addf %10, %12 : vector<128x256xf32>
    %cst_11 = arith.constant 0.000000e+00 : f32
    %14 = vector.broadcast %cst_11 : f32 to vector<128x256xf32>
    %15 = arith.maximumf %13, %14 : vector<128x256xf32>
    %c0_12 = arith.constant 0 : index
    %c0_13 = arith.constant 0 : index
    %16 = vector.load %arg5[%c0_12, %c0_13] : memref<1x256xf32, #tpu.memory_space<vmem>>, vector<1x256xf32>
    %17 = vector.broadcast %16 : vector<1x256xf32> to vector<128x256xf32>
    %18 = arith.mulf %15, %17 : vector<128x256xf32>
    %cst_14 = arith.constant dense<0.000000e+00> : vector<128xf32>
    %19 = vector.multi_reduction <add>, %18, %cst_14 [1] : vector<128x256xf32> to vector<128xf32>
    %20 = vector.shape_cast %19 : vector<128xf32> to vector<128x1xf32>
    %c0_15 = arith.constant 0 : index
    %c0_16 = arith.constant 0 : index
    %21 = memref.load %arg6[%c0_15, %c0_16] : memref<1x1xf32, #tpu.memory_space<smem>>
    %22 = vector.broadcast %21 : f32 to vector<128x1xf32>
    %23 = arith.addf %20, %22 : vector<128x1xf32>
    %24 = arith.negf %23 : vector<128x1xf32>
    %25 = math.exp %24 : vector<128x1xf32>
    %cst_17 = arith.constant 1.000000e+00 : f32
    %26 = vector.broadcast %cst_17 : f32 to vector<128x1xf32>
    %27 = arith.addf %26, %25 : vector<128x1xf32>
    %28 = arith.divf %26, %27 : vector<128x1xf32>
    %c0_18 = arith.constant 0 : index
    %c0_19 = arith.constant 0 : index
    %29 = vector.load %arg7[%c0_18, %c0_19] : memref<128x1xf32, #tpu.memory_space<vmem>>, vector<128x1xf32>
    tpu.vector_store %arg7[%c0_18, %c0_19], %28 {strides = array<i32>} : memref<128x1xf32, #tpu.memory_space<vmem>>, vector<128x1xf32>,
    return
  }
  func.func @transform_0(%arg0: i32) -> (i32, i32) {
    %c0_i32 = arith.constant 0 : i32
    %c0_i32_0 = arith.constant 0 : i32
    return %arg0, %c0_i32 : i32, i32
  }
  func.func @transform_1(%arg0: i32) -> (i32, i32) {
    %c0_i32 = arith.constant 0 : i32
    %c0_i32_0 = arith.constant 0 : i32
    return %arg0, %c0_i32 : i32, i32
  }
  func.func @transform_2(%arg0: i32) -> (i32, i32, i32) {
    %c0_i32 = arith.constant 0 : i32
    %c0_i32_0 = arith.constant 0 : i32
    %c0_i32_1 = arith.constant 0 : i32
    %c0_i32_2 = arith.constant 0 : i32
    return %c0_i32, %c0_i32_0, %c0_i32_1 : i32, i32, i32
  }
  func.func @transform_3(%arg0: i32) -> (i32, i32) {
    %c0_i32 = arith.constant 0 : i32
    %c0_i32_0 = arith.constant 0 : i32
    %c0_i32_1 = arith.constant 0 : i32
    return %c0_i32, %c0_i32_0 : i32, i32
  }
  func.func @transform_4(%arg0: i32) -> (i32, i32) {
    %c0_i32 = arith.constant 0 : i32
    %c0_i32_0 = arith.constant 0 : i32
    %c0_i32_1 = arith.constant 0 : i32
    return %c0_i32, %c0_i32_0 : i32, i32
  }
  func.func @transform_5(%arg0: i32) -> (i32, i32) {
    %c0_i32 = arith.constant 0 : i32
    %c0_i32_0 = arith.constant 0 : i32
    %c0_i32_1 = arith.constant 0 : i32
    return %c0_i32, %c0_i32_0 : i32, i32
  }
  func.func @transform_6(%arg0: i32) -> (i32, i32) {
    %c0_i32 = arith.constant 0 : i32
    %c0_i32_0 = arith.constant 0 : i32
    return %arg0, %c0_i32 : i32, i32
  }
}

</mosaic_0001>

<llo_original>
// kernel: tpu_custom_call.1
$region0: #{tpu_custom_call.1}
  #allocation0 [shape = 'u32[]', space=smem, size = 0x4, offset = 0x4, fixed_abs, tag = 'smem constant byte address 0x4 - core index']
  #allocation1 [shape = 'u32[144,128]{1,0:T(1,128)}', space=vmem, size = 0x12000, scoped, tag = 'internal scratch']
  #allocation2 [shape = 'f32[1,1]{1,0:T(1,128)S(6)}', space=smem, size = 0x200, scoped, tag = 'scoped memory for tpu_custom_call.1']
  %s0 = inlined_call_operand.hbm [shape: f32[512,256], index: 0, kind: input, shape index: {}]
  %s1 = inlined_call_operand.hbm [shape: f32[512,256], index: 1, kind: input, shape index: {}]
  %s2 = inlined_call_operand.hbm [shape: bf16[2,256,256], index: 2, kind: input, shape index: {}]
  %s3 = inlined_call_operand.vmem [shape: f32[1,256], index: 3, kind: input, shape index: {}]
  %s4 = inlined_call_operand.vmem [shape: f32[1,256], index: 4, kind: input, shape index: {}]
  %s5 = inlined_call_operand.<no memory space> [shape: f32[1,1], index: 5, kind: input, shape index: {}]
  %s6 = inlined_call_operand.vmem [shape: f32[512,1], index: 6, kind: output, shape index: {}]
  %s7 = sld [smem:[#allocation0]]
  $region69: #{tpu_custom_call.1} parent=0
    _
  %s9 = ssub.s32 1, %s7
  %s10 = scalar_select 0, %s9, %s7
  %11 = sst [smem:[#allocation2]] %s5
  $region1: #{tpu_custom_call.1} parent=0
    #allocation3 [shape = 'u8[262144]{0}', space=vmem, size = 0x40000, scoped, tag = 'input window, operand 0']
    #allocation4 [shape = 's32[2]{0}', space=sflag, size = 0x8, scoped, tag = 'scoped memory for tpu_custom_call.1']
    #allocation5 [shape = 'u8[262144]{0}', space=vmem, size = 0x40000, scoped, tag = 'input window, operand 1']
    #allocation6 [shape = 's32[2]{0}', space=sflag, size = 0x8, scoped, tag = 'scoped memory for tpu_custom_call.1']
    #allocation7 [shape = 'u8[262144]{0}', space=vmem, size = 0x40000, scoped, tag = 'input window, operand 2, single buffered']
    %12 = vsyncpa [#allocation4], 0
    %s13 = scalar_lea.sflag [#allocation4], 1
    %14 = vsyncpa %s13, 0
    %15 = vsyncpa [#allocation6], 0
    %s16 = scalar_lea.sflag [#allocation6], 1
    %17 = vsyncpa %s16, 0
    loop: start=0, step=1, limit=6
    $region2: #{tpu_custom_call.1} parent=1 // loop_pre_header
      _
    $region3: #{tpu_custom_call.1} parent=1 // loop_header
      %s19 = sphi 0, %s23
      %p20 = scmp.ge.s32.totalorder %s19, 6
      %s29 = sphi 0, %s31
      %s32 = sphi 0, %s29
      %s33 = sphi 0, %s32
      %s49 = sphi 0, %s33
      %s55 = sphi 0, %s57
      %s58 = sphi 0, %s55
      %s59 = sphi 0, %s58
      %s75 = sphi 0, %s59
      %s79 = sphi 0, %s79
      %s81 = sphi 0, %s79
      %s82 = sphi 0, %s81
      %s96 = sphi 0, %s82
      %s100 = sphi 0, %s100
      %s102 = sphi 0, %s100
      %s103 = sphi 0, %s102
      %s117 = sphi 0, %s103
      %s121 = sphi 0, %s121
      %s123 = sphi 0, %s121
      %s124 = sphi 0, %s123
      %s138 = sphi 0, %s124
      %s142 = sphi 0, %s142
      %s144 = sphi 0, %s142
      %s145 = sphi 0, %s144
      %s159 = sphi 0, %s145
      %s165 = sphi 0, %s167
      %s168 = sphi 0, %s165
      %s169 = sphi 0, %s168
      %s185 = sphi 0, %s169
    $region4: #{tpu_custom_call.1} parent=1 // loop_header_branch
      %22 = sbr.rel (%p20) target = $region8
    $region5: #{tpu_custom_call.1} parent=1 // loop_body
      %s24 = ssub.s32 %s19, 1
      %s25 = ssub.s32 %s19, 2
      %s26 = sadd.s32 %s19, 1
      %s27 = ssub.s32 %s19, %s26
      %p28 = scmp.eq.s32.totalorder %s27, 0
      %s30 = sadd.s32 %s29, 1
      %s31 = scalar_select %p28, %s29, %s30
      %p34 = pneg %p28
      %p35 = scmp.eq.s32.totalorder %s19, 3
      %p36 = por %p34, %p35
      %p37 = scmp.ne.s32.totalorder %s29, %s32
      %p38 = scmp.eq.s32.totalorder %s19, 0
      %p39 = por %p37, %p38
      %p40 = scmp.ne.s32.totalorder %s29, %s32
      %p41 = scmp.eq.s32.totalorder %s24, 3
      %p42 = por %p40, %p41
      %p43 = scmp.ne.s32.totalorder %s32, %s33
      %p44 = scmp.eq.s32.totalorder %s24, 0
      %p45 = por %p43, %p44
      %p46 = scmp.ne.s32.totalorder %s32, %s33
      %p47 = scmp.eq.s32.totalorder %s25, 3
      %p48 = por %p46, %p47
      %p50 = scmp.ne.s32.totalorder %s33, %s49
      %p51 = scmp.eq.s32.totalorder %s25, 0
      %p52 = por %p50, %p51
      %s53 = ssub.s32 %s19, %s26
      %p54 = scmp.eq.s32.totalorder %s53, 0
      %s56 = sadd.s32 %s55, 1
      %s57 = scalar_select %p54, %s55, %s56
      %p60 = pneg %p54
      %p61 = scmp.eq.s32.totalorder %s19, 3
      %p62 = por %p60, %p61
      %p63 = scmp.ne.s32.totalorder %s55, %s58
      %p64 = scmp.eq.s32.totalorder %s19, 0
      %p65 = por %p63, %p64
      %p66 = scmp.ne.s32.totalorder %s55, %s58
      %p67 = scmp.eq.s32.totalorder %s24, 3
      %p68 = por %p66, %p67
      %p69 = scmp.ne.s32.totalorder %s58, %s59
      %p70 = scmp.eq.s32.totalorder %s24, 0
      %p71 = por %p69, %p70
      %p72 = scmp.ne.s32.totalorder %s58, %s59
      %p73 = scmp.eq.s32.totalorder %s25, 3
      %p74 = por %p72, %p73
      %p76 = scmp.ne.s32.totalorder %s59, %s75
      %p77 = scmp.eq.s32.totalorder %s25, 0
      %p78 = por %p76, %p77
      %s80 = sadd.s32 %s79, 1
      %p83 = scmp.eq.s32.totalorder %s19, 3
      %p84 = scmp.ne.s32.totalorder %s79, %s81
      %p85 = scmp.eq.s32.totalorder %s19, 0
      %p86 = por %p84, %p85
      %p87 = scmp.ne.s32.totalorder %s79, %s81
      %p88 = scmp.eq.s32.totalorder %s24, 3
      %p89 = por %p87, %p88
      %p90 = scmp.ne.s32.totalorder %s81, %s82
      %p91 = scmp.eq.s32.totalorder %s24, 0
      %p92 = por %p90, %p91
      %p93 = scmp.ne.s32.totalorder %s81, %s82
      %p94 = scmp.eq.s32.totalorder %s25, 3
      %p95 = por %p93, %p94
      %p97 = scmp.ne.s32.totalorder %s82, %s96
      %p98 = scmp.eq.s32.totalorder %s25, 0
      %p99 = por %p97, %p98
      %s101 = sadd.s32 %s100, 1
      %p104 = scmp.eq.s32.totalorder %s19, 3
      %p105 = scmp.ne.s32.totalorder %s100, %s102
      %p106 = scmp.eq.s32.totalorder %s19, 0
      %p107 = por %p105, %p106
      %p108 = scmp.ne.s32.totalorder %s100, %s102
      %p109 = scmp.eq.s32.totalorder %s24, 3
      %p110 = por %p108, %p109
      %p111 = scmp.ne.s32.totalorder %s102, %s103
      %p112 = scmp.eq.s32.totalorder %s24, 0
      %p113 = por %p111, %p112
      %p114 = scmp.ne.s32.totalorder %s102, %s103
      %p115 = scmp.eq.s32.totalorder %s25, 3
      %p116 = por %p114, %p115
      %p118 = scmp.ne.s32.totalorder %s103, %s117
      %p119 = scmp.eq.s32.totalorder %s25, 0
      %p120 = por %p118, %p119
      %s122 = sadd.s32 %s121, 1
      %p125 = scmp.eq.s32.totalorder %s19, 3
      %p126 = scmp.ne.s32.totalorder %s121, %s123
      %p127 = scmp.eq.s32.totalorder %s19, 0
      %p128 = por %p126, %p127
      %p129 = scmp.ne.s32.totalorder %s121, %s123
      %p130 = scmp.eq.s32.totalorder %s24, 3
      %p131 = por %p129, %p130
      %p132 = scmp.ne.s32.totalorder %s123, %s124
      %p133 = scmp.eq.s32.totalorder %s24, 0
      %p134 = por %p132, %p133
      %p135 = scmp.ne.s32.totalorder %s123, %s124
      %p136 = scmp.eq.s32.totalorder %s25, 3
      %p137 = por %p135, %p136
      %p139 = scmp.ne.s32.totalorder %s124, %s138
      %p140 = scmp.eq.s32.totalorder %s25, 0
      %p141 = por %p139, %p140
      %s143 = sadd.s32 %s142, 1
      %p146 = scmp.eq.s32.totalorder %s19, 3
      %p147 = scmp.ne.s32.totalorder %s142, %s144
      %p148 = scmp.eq.s32.totalorder %s19, 0
      %p149 = por %p147, %p148
      %p150 = scmp.ne.s32.totalorder %s142, %s144
      %p151 = scmp.eq.s32.totalorder %s24, 3
      %p152 = por %p150, %p151
      %p153 = scmp.ne.s32.totalorder %s144, %s145
      %p154 = scmp.eq.s32.totalorder %s24, 0
      %p155 = por %p153, %p154
      %p156 = scmp.ne.s32.totalorder %s144, %s145
      %p157 = scmp.eq.s32.totalorder %s25, 3
      %p158 = por %p156, %p157
      %p160 = scmp.ne.s32.totalorder %s145, %s159
      %p161 = scmp.eq.s32.totalorder %s25, 0
      %p162 = por %p160, %p161
      %s163 = ssub.s32 %s19, %s26
      %p164 = scmp.eq.s32.totalorder %s163, 0
      %s166 = sadd.s32 %s165, 1
      %s167 = scalar_select %p164, %s165, %s166
      %p170 = pneg %p164
      %p171 = scmp.eq.s32.totalorder %s19, 3
      %p172 = por %p170, %p171
      %p173 = scmp.ne.s32.totalorder %s165, %s168
      %p174 = scmp.eq.s32.totalorder %s19, 0
      %p175 = por %p173, %p174
      %p176 = scmp.ne.s32.totalorder %s165, %s168
      %p177 = scmp.eq.s32.totalorder %s24, 3
      %p178 = por %p176, %p177
      %p179 = scmp.ne.s32.totalorder %s168, %s169
      %p180 = scmp.eq.s32.totalorder %s24, 0
      %p181 = por %p179, %p180
      %p182 = scmp.ne.s32.totalorder %s168, %s169
      %p183 = scmp.eq.s32.totalorder %s25, 3
      %p184 = por %p182, %p183
      %p186 = scmp.ne.s32.totalorder %s169, %s185
      %p187 = scmp.eq.s32.totalorder %s25, 0
      %p188 = por %p186, %p187
      %p189 = scmp.le.s32.totalorder 1, %s19
      %p190 = scmp.lt.s32.totalorder %s19, 5
      %p191 = pnand %p189, %p190
      %p192 = pneg %p191
      // Predicated region
      $region9: #{tpu_custom_call.1} parent=5 // pred_check
        _
      $region10: #{tpu_custom_call.1} parent=5 // pred_check_branch
        %194 = sbr.rel (%p191) target = $region12
      $region11: #{tpu_custom_call.1} parent=5 // pred_region
        %s195 = ssub.s32 %s19, 1
        // Predicated region
        $region13: #{tpu_custom_call.1} parent=11 // pred_check
          %p196 = pneg %p92
        $region14: #{tpu_custom_call.1} parent=11 // pred_check_branch
          %198 = sbr.rel (%p196) target = $region16
        $region15: #{tpu_custom_call.1} parent=11 // pred_region
          %s200 = ssub.s32 8192, 8192
          %201 = vsyncadd [#allocation6], %s200
          %s202 = sshll.u32 [#allocation7], 4
          %s203 = int_to_ptr.vmem [resolvable:$true] %s202
          %208 = dma.hbm_to_vmem [thread:$0]  %s2, 8192, %s203, [#allocation6], 128, 128, 8
        $region16: #{tpu_custom_call.1} parent=11 // pred_fallthru
          _
        // Predicated region
        $region17: #{tpu_custom_call.1} parent=11 // pred_check
          %p209 = pneg %p113
        $region18: #{tpu_custom_call.1} parent=11 // pred_check_branch
          %211 = sbr.rel (%p209) target = $region20
        $region19: #{tpu_custom_call.1} parent=11 // pred_region
          _
        $region20: #{tpu_custom_call.1} parent=11 // pred_fallthru
          _
        // Predicated region
        $region21: #{tpu_custom_call.1} parent=11 // pred_check
          %p212 = pneg %p134
        $region22: #{tpu_custom_call.1} parent=11 // pred_check_branch
          %214 = sbr.rel (%p212) target = $region24
        $region23: #{tpu_custom_call.1} parent=11 // pred_region
          _
        $region24: #{tpu_custom_call.1} parent=11 // pred_fallthru
          _
        // Predicated region
        $region25: #{tpu_custom_call.1} parent=11 // pred_check
          %p215 = pneg %p155
        $region26: #{tpu_custom_call.1} parent=11 // pred_check_branch
          %217 = sbr.rel (%p215) target = $region28
        $region27: #{tpu_custom_call.1} parent=11 // pred_region
          _
        $region28: #{tpu_custom_call.1} parent=11 // pred_fallthru
          _
      $region12: #{tpu_custom_call.1} parent=5 // pred_fallthru
        _
      %p218 = scmp.lt.s32.totalorder %s19, 4
      // Predicated region
      $region29: #{tpu_custom_call.1} parent=5 // pred_check
        %p219 = pneg %p218
      $region30: #{tpu_custom_call.1} parent=5 // pred_check_branch
        %221 = sbr.rel (%p219) target = $region32
      $region31: #{tpu_custom_call.1} parent=5 // pred_region
        // Predicated region
        $region33: #{tpu_custom_call.1} parent=31 // pred_check
          %p222 = pneg %p39
        $region34: #{tpu_custom_call.1} parent=31 // pred_check_branch
          %224 = sbr.rel (%p222) target = $region36
        $region35: #{tpu_custom_call.1} parent=31 // pred_region
          %s225 = sand.u32 %s29, 1
          %s226 = scalar_lea.sflag [#allocation4], %s225
          %s227 = sand.u32 %s29, 1
          %s228 = smul.addr %s227, 256
          %s229 = scalar_lea.vmem [#allocation3], %s228
          %s230 = smul.u32 16, %s19
          %s232 = ssub.s32 4096, 4096
          %233 = vsyncadd %s226, %s232
          %s234 = smul.addr %s230, 2
          %s235 = smul.addr %s234, 128
          %s236 = scalar_lea.hbm %s0, %s235
          %s237 = sshll.u32 %s229, 4
          %s238 = int_to_ptr.vmem [resolvable:$true] %s237
          %243 = dma.hbm_to_vmem [thread:$0]  %s236, 4096, %s238, %s226, 256, 256, 16
        $region36: #{tpu_custom_call.1} parent=31 // pred_fallthru
          _
        // Predicated region
        $region37: #{tpu_custom_call.1} parent=31 // pred_check
          %p244 = pneg %p65
        $region38: #{tpu_custom_call.1} parent=31 // pred_check_branch
          %246 = sbr.rel (%p244) target = $region40
        $region39: #{tpu_custom_call.1} parent=31 // pred_region
          %s247 = sand.u32 %s19, 1
          %s248 = scalar_lea.sflag [#allocation6], %s247
          %s249 = sand.u32 %s55, 1
          %s250 = smul.addr %s249, 256
          %s251 = scalar_lea.vmem [#allocation5], %s250
          %s252 = smul.u32 16, %s19
          %s254 = ssub.s32 4096, 4096
          %255 = vsyncadd %s248, %s254
          %s256 = smul.addr %s252, 2
          %s257 = smul.addr %s256, 128
          %s258 = scalar_lea.hbm %s1, %s257
          %s259 = sshll.u32 %s251, 4
          %s260 = int_to_ptr.vmem [resolvable:$true] %s259
          %265 = dma.hbm_to_vmem [thread:$0]  %s258, 4096, %s260, %s248, 256, 256, 16
        $region40: #{tpu_custom_call.1} parent=31 // pred_fallthru
          _
      $region32: #{tpu_custom_call.1} parent=5 // pred_fallthru
        _
      %p266 = scmp.le.s32.totalorder 1, %s19
      %p267 = scmp.lt.s32.totalorder %s19, 5
      %p268 = pnand %p266, %p267
      %p269 = pneg %p268
      // Predicated region
      $region41: #{tpu_custom_call.1} parent=5 // pred_check
        _
      $region42: #{tpu_custom_call.1} parent=5 // pred_check_branch
        %271 = sbr.rel (%p268) target = $region44
      $region43: #{tpu_custom_call.1} parent=5 // pred_region
        %s272 = ssub.s32 %s19, 1
        %s273 = sand.u32 %s32, 1
        %s274 = scalar_lea.sflag [#allocation4], %s273
        %s275 = sand.u32 %s32, 1
        %s276 = smul.addr %s275, 256
        %s277 = scalar_lea.vmem [#allocation3], %s276
        // Predicated region
        $region45: #{tpu_custom_call.1} parent=43 // pred_check
          %p278 = pneg %p45
        $region46: #{tpu_custom_call.1} parent=43 // pred_check_branch
          %280 = sbr.rel (%p278) target = $region48
        $region47: #{tpu_custom_call.1} parent=43 // pred_region
          %281 = dma.done %s274, 4096
        $region48: #{tpu_custom_call.1} parent=43 // pred_fallthru
          _
        %s282 = sand.u32 %s24, 1
        %s283 = scalar_lea.sflag [#allocation6], %s282
        %s284 = sand.u32 %s58, 1
        %s285 = smul.addr %s284, 256
        %s286 = scalar_lea.vmem [#allocation5], %s285
        // Predicated region
        $region49: #{tpu_custom_call.1} parent=43 // pred_check
          %p287 = pneg %p71
        $region50: #{tpu_custom_call.1} parent=43 // pred_check_branch
          %289 = sbr.rel (%p287) target = $region52
        $region51: #{tpu_custom_call.1} parent=43 // pred_region
          %290 = dma.done %s283, 4096
        $region52: #{tpu_custom_call.1} parent=43 // pred_fallthru
          _
        // Predicated region
        $region53: #{tpu_custom_call.1} parent=43 // pred_check
          %p291 = pneg %p92
        $region54: #{tpu_custom_call.1} parent=43 // pred_check_branch
          %293 = sbr.rel (%p291) target = $region56
        $region55: #{tpu_custom_call.1} parent=43 // pred_region
          %294 = dma.done [#allocation6], 8192
        $region56: #{tpu_custom_call.1} parent=43 // pred_fallthru
          _
        %s295 = sand.u32 %s32, 1
        %s296 = scalar_lea.sflag [#allocation4], %s295
        %s297 = sand.u32 %s32, 1
        %s298 = smul.addr %s297, 256
        %s299 = scalar_lea.vmem [#allocation3], %s298
        %p300 = pneg %p45
        %p301 = pneg %p42
        %s302 = sand.u32 %s24, 1
        %s303 = scalar_lea.sflag [#allocation6], %s302
        %s304 = sand.u32 %s58, 1
        %s305 = smul.addr %s304, 256
        %s306 = scalar_lea.vmem [#allocation5], %s305
        %p307 = pneg %p71
        %p308 = pneg %p68
        %p309 = pneg %p92
        %p310 = pneg %p89
        %p311 = pneg %p113
        %p312 = pneg %p110
        %p313 = pneg %p134
        %p314 = pneg %p131
        %p315 = pneg %p155
        %p316 = pneg %p152
        %p317 = pneg %p181
        %p318 = pneg %p178
        %s319 = smul.u32 16, %s24
        %p320 = scmp.lt.s32.totalorder %s319, 63
        %s321 = scalar_select %p320, %s319, 63
        %s322 = smul.addr %s321, 8
        %s323 = scalar_lea.vmem %s6, %s322
        %s324 = smul.u32 16, %s24
        %s325 = smul.u32 16, %s24
        %s326 = smul.u32 16, %s24
        %p327 = scmp.lt.s32.totalorder %s326, 63
        %s328 = scalar_select %p327, %s326, 63
        %s329 = smul.addr %s328, 8
        %s330 = scalar_lea.vmem %s6, %s329
        %s331 = smul.u32 16, %s24
        %v332 = vld [vmem:[%s277] sm:$0xff]
        %v333 = vld [vmem:[%s277 + $0x8] sm:$0xff]
        %v334 = vld [vmem:[%s277 + $0x10] sm:$0xff]
        %v335 = vld [vmem:[%s277 + $0x18] sm:$0xff]
        %v336 = vld [vmem:[%s277 + $0x20] sm:$0xff]
        %v337 = vld [vmem:[%s277 + $0x28] sm:$0xff]
        %v338 = vld [vmem:[%s277 + $0x30] sm:$0xff]
        %v339 = vld [vmem:[%s277 + $0x38] sm:$0xff]
        %v340 = vld [vmem:[%s277 + $0x40] sm:$0xff]
        %v341 = vld [vmem:[%s277 + $0x48] sm:$0xff]
        %v342 = vld [vmem:[%s277 + $0x50] sm:$0xff]
        %v343 = vld [vmem:[%s277 + $0x58] sm:$0xff]
        %v344 = vld [vmem:[%s277 + $0x60] sm:$0xff]
        %v345 = vld [vmem:[%s277 + $0x68] sm:$0xff]
        %v346 = vld [vmem:[%s277 + $0x70] sm:$0xff]
        %v347 = vld [vmem:[%s277 + $0x78] sm:$0xff]
        %v348 = vld [vmem:[%s277 + $0x80] sm:$0xff]
        %v349 = vld [vmem:[%s277 + $0x88] sm:$0xff]
        %v350 = vld [vmem:[%s277 + $0x90] sm:$0xff]
        %v351 = vld [vmem:[%s277 + $0x98] sm:$0xff]
        %v352 = vld [vmem:[%s277 + $0xa0] sm:$0xff]
        %v353 = vld [vmem:[%s277 + $0xa8] sm:$0xff]
        %v354 = vld [vmem:[%s277 + $0xb0] sm:$0xff]
        %v355 = vld [vmem:[%s277 + $0xb8] sm:$0xff]
        %v356 = vld [vmem:[%s277 + $0xc0] sm:$0xff]
        %v357 = vld [vmem:[%s277 + $0xc8] sm:$0xff]
        %v358 = vld [vmem:[%s277 + $0xd0] sm:$0xff]
        %v359 = vld [vmem:[%s277 + $0xd8] sm:$0xff]
        %v360 = vld [vmem:[%s277 + $0xe0] sm:$0xff]
        %v361 = vld [vmem:[%s277 + $0xe8] sm:$0xff]
        %v362 = vld [vmem:[%s277 + $0xf0] sm:$0xff]
        %v363 = vld [vmem:[%s277 + $0xf8] sm:$0xff]
        %v364 = vpack.c.bf16 %v334, %v332
        %v365 = vpack.c.bf16 %v335, %v333
        %v366 = vpack.c.bf16 %v338, %v336
        %v367 = vpack.c.bf16 %v339, %v337
        %v368 = vpack.c.bf16 %v342, %v340
        %v369 = vpack.c.bf16 %v343, %v341
        %v370 = vpack.c.bf16 %v346, %v344
        %v371 = vpack.c.bf16 %v347, %v345
        %v372 = vpack.c.bf16 %v350, %v348
        %v373 = vpack.c.bf16 %v351, %v349
        %v374 = vpack.c.bf16 %v354, %v352
        %v375 = vpack.c.bf16 %v355, %v353
        %v376 = vpack.c.bf16 %v358, %v356
        %v377 = vpack.c.bf16 %v359, %v357
        %v378 = vpack.c.bf16 %v362, %v360
        %v379 = vpack.c.bf16 %v363, %v361
        %v380 = vld [vmem:[%s286] sm:$0xff]
        %v381 = vld [vmem:[%s286 + $0x8] sm:$0xff]
        %v382 = vld [vmem:[%s286 + $0x10] sm:$0xff]
        %v383 = vld [vmem:[%s286 + $0x18] sm:$0xff]
        %v384 = vld [vmem:[%s286 + $0x20] sm:$0xff]
        %v385 = vld [vmem:[%s286 + $0x28] sm:$0xff]
        %v386 = vld [vmem:[%s286 + $0x30] sm:$0xff]
        %v387 = vld [vmem:[%s286 + $0x38] sm:$0xff]
        %v388 = vld [vmem:[%s286 + $0x40] sm:$0xff]
        %v389 = vld [vmem:[%s286 + $0x48] sm:$0xff]
        %v390 = vld [vmem:[%s286 + $0x50] sm:$0xff]
        %v391 = vld [vmem:[%s286 + $0x58] sm:$0xff]
        %v392 = vld [vmem:[%s286 + $0x60] sm:$0xff]
        %v393 = vld [vmem:[%s286 + $0x68] sm:$0xff]
        %v394 = vld [vmem:[%s286 + $0x70] sm:$0xff]
        %v395 = vld [vmem:[%s286 + $0x78] sm:$0xff]
        %v396 = vld [vmem:[%s286 + $0x80] sm:$0xff]
        %v397 = vld [vmem:[%s286 + $0x88] sm:$0xff]
        %v398 = vld [vmem:[%s286 + $0x90] sm:$0xff]
        %v399 = vld [vmem:[%s286 + $0x98] sm:$0xff]
        %v400 = vld [vmem:[%s286 + $0xa0] sm:$0xff]
        %v401 = vld [vmem:[%s286 + $0xa8] sm:$0xff]
        %v402 = vld [vmem:[%s286 + $0xb0] sm:$0xff]
        %v403 = vld [vmem:[%s286 + $0xb8] sm:$0xff]
        %v404 = vld [vmem:[%s286 + $0xc0] sm:$0xff]
        %v405 = vld [vmem:[%s286 + $0xc8] sm:$0xff]
        %v406 = vld [vmem:[%s286 + $0xd0] sm:$0xff]
        %v407 = vld [vmem:[%s286 + $0xd8] sm:$0xff]
        %v408 = vld [vmem:[%s286 + $0xe0] sm:$0xff]
        %v409 = vld [vmem:[%s286 + $0xe8] sm:$0xff]
        %v410 = vld [vmem:[%s286 + $0xf0] sm:$0xff]
        %v411 = vld [vmem:[%s286 + $0xf8] sm:$0xff]
        %v412 = vpack.c.bf16 %v382, %v380
        %v413 = vpack.c.bf16 %v383, %v381
        %v414 = vpack.c.bf16 %v386, %v384
        %v415 = vpack.c.bf16 %v387, %v385
        %v416 = vpack.c.bf16 %v390, %v388
        %v417 = vpack.c.bf16 %v391, %v389
        %v418 = vpack.c.bf16 %v394, %v392
        %v419 = vpack.c.bf16 %v395, %v393
        %v420 = vpack.c.bf16 %v398, %v396
        %v421 = vpack.c.bf16 %v399, %v397
        %v422 = vpack.c.bf16 %v402, %v400
        %v423 = vpack.c.bf16 %v403, %v401
        %v424 = vpack.c.bf16 %v406, %v404
        %v425 = vpack.c.bf16 %v407, %v405
        %v426 = vpack.c.bf16 %v410, %v408
        %v427 = vpack.c.bf16 %v411, %v409
        %v428 = vld [vmem:[#allocation7] sm:$0xff]
        %v429 = vld [vmem:[#allocation7 + $0x8] sm:$0xff]
        %v430 = vld [vmem:[#allocation7 + $0x10] sm:$0xff]
        %v431 = vld [vmem:[#allocation7 + $0x18] sm:$0xff]
        %v432 = vld [vmem:[#allocation7 + $0x20] sm:$0xff]
        %v433 = vld [vmem:[#allocation7 + $0x28] sm:$0xff]
        %v434 = vld [vmem:[#allocation7 + $0x30] sm:$0xff]
        %v435 = vld [vmem:[#allocation7 + $0x38] sm:$0xff]
        %v436 = vld [vmem:[#allocation7 + $0x40] sm:$0xff]
        %v437 = vld [vmem:[#allocation7 + $0x48] sm:$0xff]
        %v438 = vld [vmem:[#allocation7 + $0x50] sm:$0xff]
        %v439 = vld [vmem:[#allocation7 + $0x58] sm:$0xff]
        %v440 = vld [vmem:[#allocation7 + $0x60] sm:$0xff]
        %v441 = vld [vmem:[#allocation7 + $0x68] sm:$0xff]
        %v442 = vld [vmem:[#allocation7 + $0x70] sm:$0xff]
        %v443 = vld [vmem:[#allocation7 + $0x78] sm:$0xff]
        %v444 = vld [vmem:[#allocation7 + $0x80] sm:$0xff]
        %v445 = vld [vmem:[#allocation7 + $0x88] sm:$0xff]
        %v446 = vld [vmem:[#allocation7 + $0x90] sm:$0xff]
        %v447 = vld [vmem:[#allocation7 + $0x98] sm:$0xff]
        %v448 = vld [vmem:[#allocation7 + $0xa0] sm:$0xff]
        %v449 = vld [vmem:[#allocation7 + $0xa8] sm:$0xff]
        %v450 = vld [vmem:[#allocation7 + $0xb0] sm:$0xff]
        %v451 = vld [vmem:[#allocation7 + $0xb8] sm:$0xff]
        %v452 = vld [vmem:[#allocation7 + $0xc0] sm:$0xff]
        %v453 = vld [vmem:[#allocation7 + $0xc8] sm:$0xff]
        %v454 = vld [vmem:[#allocation7 + $0xd0] sm:$0xff]
        %v455 = vld [vmem:[#allocation7 + $0xd8] sm:$0xff]
        %v456 = vld [vmem:[#allocation7 + $0xe0] sm:$0xff]
        %v457 = vld [vmem:[#allocation7 + $0xe8] sm:$0xff]
        %v458 = vld [vmem:[#allocation7 + $0xf0] sm:$0xff]
        %v459 = vld [vmem:[#allocation7 + $0xf8] sm:$0xff]
        %s460 = scalar_lea.vmem [#allocation7], 256
        %v461 = vld [vmem:[%s460] sm:$0xff]
        %v462 = vld [vmem:[%s460 + $0x8] sm:$0xff]
        %v463 = vld [vmem:[%s460 + $0x10] sm:$0xff]
        %v464 = vld [vmem:[%s460 + $0x18] sm:$0xff]
        %v465 = vld [vmem:[%s460 + $0x20] sm:$0xff]
        %v466 = vld [vmem:[%s460 + $0x28] sm:$0xff]
        %v467 = vld [vmem:[%s460 + $0x30] sm:$0xff]
        %v468 = vld [vmem:[%s460 + $0x38] sm:$0xff]
        %v469 = vld [vmem:[%s460 + $0x40] sm:$0xff]
        %v470 = vld [vmem:[%s460 + $0x48] sm:$0xff]
        %v471 = vld [vmem:[%s460 + $0x50] sm:$0xff]
        %v472 = vld [vmem:[%s460 + $0x58] sm:$0xff]
        %v473 = vld [vmem:[%s460 + $0x60] sm:$0xff]
        %v474 = vld [vmem:[%s460 + $0x68] sm:$0xff]
        %v475 = vld [vmem:[%s460 + $0x70] sm:$0xff]
        %v476 = vld [vmem:[%s460 + $0x78] sm:$0xff]
        %v477 = vld [vmem:[%s460 + $0x80] sm:$0xff]
        %v478 = vld [vmem:[%s460 + $0x88] sm:$0xff]
        %v479 = vld [vmem:[%s460 + $0x90] sm:$0xff]
        %v480 = vld [vmem:[%s460 + $0x98] sm:$0xff]
        %v481 = vld [vmem:[%s460 + $0xa0] sm:$0xff]
        %v482 = vld [vmem:[%s460 + $0xa8] sm:$0xff]
        %v483 = vld [vmem:[%s460 + $0xb0] sm:$0xff]
        %v484 = vld [vmem:[%s460 + $0xb8] sm:$0xff]
        %v485 = vld [vmem:[%s460 + $0xc0] sm:$0xff]
        %v486 = vld [vmem:[%s460 + $0xc8] sm:$0xff]
        %v487 = vld [vmem:[%s460 + $0xd0] sm:$0xff]
        %v488 = vld [vmem:[%s460 + $0xd8] sm:$0xff]
        %v489 = vld [vmem:[%s460 + $0xe0] sm:$0xff]
        %v490 = vld [vmem:[%s460 + $0xe8] sm:$0xff]
        %v491 = vld [vmem:[%s460 + $0xf0] sm:$0xff]
        %v492 = vld [vmem:[%s460 + $0xf8] sm:$0xff]
        %v525 = vunpack.c.l.b16 %v461
        %v526 = vunpack.c.h.b16 %v461
        %v527 = vunpack.c.l.b16 %v462
        %v528 = vunpack.c.h.b16 %v462
        %v529 = vunpack.c.l.b16 %v463
        %v530 = vunpack.c.h.b16 %v463
        %v531 = vunpack.c.l.b16 %v464
        %v532 = vunpack.c.h.b16 %v464
        %v533 = vunpack.c.l.b16 %v465
        %v534 = vunpack.c.h.b16 %v465
        %v535 = vunpack.c.l.b16 %v466
        %v536 = vunpack.c.h.b16 %v466
        %v537 = vunpack.c.l.b16 %v467
        %v538 = vunpack.c.h.b16 %v467
        %v539 = vunpack.c.l.b16 %v468
        %v540 = vunpack.c.h.b16 %v468
        %v541 = vunpack.c.l.b16 %v469
        %v542 = vunpack.c.h.b16 %v469
        %v543 = vunpack.c.l.b16 %v470
        %v544 = vunpack.c.h.b16 %v470
        %v545 = vunpack.c.l.b16 %v471
        %v546 = vunpack.c.h.b16 %v471
        %v547 = vunpack.c.l.b16 %v472
        %v548 = vunpack.c.h.b16 %v472
        %v549 = vunpack.c.l.b16 %v473
        %v550 = vunpack.c.h.b16 %v473
        %v551 = vunpack.c.l.b16 %v474
        %v552 = vunpack.c.h.b16 %v474
        %v553 = vunpack.c.l.b16 %v475
        %v554 = vunpack.c.h.b16 %v475
        %v555 = vunpack.c.l.b16 %v476
        %v556 = vunpack.c.h.b16 %v476
        %v557 = vunpack.c.l.b16 %v477
        %v558 = vunpack.c.h.b16 %v477
        %v559 = vunpack.c.l.b16 %v478
        %v560 = vunpack.c.h.b16 %v478
        %v561 = vunpack.c.l.b16 %v479
        %v562 = vunpack.c.h.b16 %v479
        %v563 = vunpack.c.l.b16 %v480
        %v564 = vunpack.c.h.b16 %v480
        %v565 = vunpack.c.l.b16 %v481
        %v566 = vunpack.c.h.b16 %v481
        %v567 = vunpack.c.l.b16 %v482
        %v568 = vunpack.c.h.b16 %v482
        %v569 = vunpack.c.l.b16 %v483
        %v570 = vunpack.c.h.b16 %v483
        %v571 = vunpack.c.l.b16 %v484
        %v572 = vunpack.c.h.b16 %v484
        %v573 = vunpack.c.l.b16 %v485
        %v574 = vunpack.c.h.b16 %v485
        %v575 = vunpack.c.l.b16 %v486
        %v576 = vunpack.c.h.b16 %v486
        %v577 = vunpack.c.l.b16 %v487
        %v578 = vunpack.c.h.b16 %v487
        %v579 = vunpack.c.l.b16 %v488
        %v580 = vunpack.c.h.b16 %v488
        %v581 = vunpack.c.l.b16 %v489
        %v582 = vunpack.c.h.b16 %v489
        %v583 = vunpack.c.l.b16 %v490
        %v584 = vunpack.c.h.b16 %v490
        %v585 = vunpack.c.l.b16 %v491
        %v586 = vunpack.c.h.b16 %v491
        %v587 = vunpack.c.l.b16 %v492
        %v588 = vunpack.c.h.b16 %v492
        %v589 = vpack.c.b16 %v527, %v525
        %v590 = vpack.c.b16 %v528, %v526
        %v591 = vpack.c.b16 %v531, %v529
        %v592 = vpack.c.b16 %v532, %v530
        %v593 = vpack.c.b16 %v535, %v533
        %v594 = vpack.c.b16 %v536, %v534
        %v595 = vpack.c.b16 %v539, %v537
        %v596 = vpack.c.b16 %v540, %v538
        %v597 = vpack.c.b16 %v543, %v541
        %v598 = vpack.c.b16 %v544, %v542
        %v599 = vpack.c.b16 %v547, %v545
        %v600 = vpack.c.b16 %v548, %v546
        %v601 = vpack.c.b16 %v551, %v549
        %v602 = vpack.c.b16 %v552, %v550
        %v603 = vpack.c.b16 %v555, %v553
        %v604 = vpack.c.b16 %v556, %v554
        %v605 = vpack.c.b16 %v559, %v557
        %v606 = vpack.c.b16 %v560, %v558
        %v607 = vpack.c.b16 %v563, %v561
        %v608 = vpack.c.b16 %v564, %v562
        %v609 = vpack.c.b16 %v567, %v565
        %v610 = vpack.c.b16 %v568, %v566
        %v611 = vpack.c.b16 %v571, %v569
        %v612 = vpack.c.b16 %v572, %v570
        %v613 = vpack.c.b16 %v575, %v573
        %v614 = vpack.c.b16 %v576, %v574
        %v615 = vpack.c.b16 %v579, %v577
        %v616 = vpack.c.b16 %v580, %v578
        %v617 = vpack.c.b16 %v583, %v581
        %v618 = vpack.c.b16 %v584, %v582
        %v619 = vpack.c.b16 %v587, %v585
        %v620 = vpack.c.b16 %v588, %v586
        %653 = vmatprep.subr.bf16.mxu0 %v590
        %654 = vmatpush1.bf16.msra.mxu0 %v589
        %655 = vmatprep.subr.bf16.mxu0 %v592
        %656 = vmatpush1.bf16.msra.mxu0 %v591
        %657 = vmatprep.subr.bf16.mxu0 %v594
        %658 = vmatpush1.bf16.msra.mxu0 %v593
        %659 = vmatprep.subr.bf16.mxu0 %v596
        %660 = vmatpush1.bf16.msra.mxu0 %v595
        %661 = vmatprep.subr.bf16.mxu0 %v598
        %662 = vmatpush1.bf16.msra.mxu0 %v597
        %663 = vmatprep.subr.bf16.mxu0 %v600
        %664 = vmatpush1.bf16.msra.mxu0 %v599
        %665 = vmatprep.subr.bf16.mxu0 %v602
        %666 = vmatpush1.bf16.msra.mxu0 %v601
        %667 = vmatprep.subr.bf16.mxu0 %v604
        %668 = vmatpush1.bf16.msra.mxu0 %v603
        %669 = vmatprep.subr.bf16.mxu0 %v606
        %670 = vmatpush1.bf16.msra.mxu0 %v605
        %671 = vmatprep.subr.bf16.mxu0 %v608
        %672 = vmatpush1.bf16.msra.mxu0 %v607
        %673 = vmatprep.subr.bf16.mxu0 %v610
        %674 = vmatpush1.bf16.msra.mxu0 %v609
        %675 = vmatprep.subr.bf16.mxu0 %v612
        %676 = vmatpush1.bf16.msra.mxu0 %v611
        %677 = vmatprep.subr.bf16.mxu0 %v614
        %678 = vmatpush1.bf16.msra.mxu0 %v613
        %679 = vmatprep.subr.bf16.mxu0 %v616
        %680 = vmatpush1.bf16.msra.mxu0 %v615
        %681 = vmatprep.subr.bf16.mxu0 %v618
        %682 = vmatpush1.bf16.msra.mxu0 %v617
        %683 = vmatprep.subr.bf16.mxu0 %v620
        %684 = vmatpush1.bf16.msra.mxu0 %v619
        %685 = vmatprep.mubr.bf16.mxu0 %v413
        %686 = vmatmul.mubr.bf16.gmra.mrb[0].mxu0 %v412
        %v687 = vpop.f32.mrb[0].mxu0
        %v688 = vadd.f32 0.0, %v687
        %v689 = vpop.f32.mrb[0].mxu0
        %v690 = vadd.f32 0.0, %v689
        %v691 = vpop.f32.mrb[0].mxu0
        %v692 = vadd.f32 0.0, %v691
        %v693 = vpop.f32.mrb[0].mxu0
        %v694 = vadd.f32 0.0, %v693
        %695 = vmatprep.mubr.bf16.mxu0 %v415
        %696 = vmatmul.mubr.bf16.gmra.mrb[0].mxu0 %v414
        %v697 = vpop.f32.mrb[0].mxu0
        %v698 = vadd.f32 0.0, %v697
        %v699 = vpop.f32.mrb[0].mxu0
        %v700 = vadd.f32 0.0, %v699
        %v701 = vpop.f32.mrb[0].mxu0
        %v702 = vadd.f32 0.0, %v701
        %v703 = vpop.f32.mrb[0].mxu0
        %v704 = vadd.f32 0.0, %v703
        %705 = vmatprep.mubr.bf16.mxu0 %v417
        %706 = vmatmul.mubr.bf16.gmra.mrb[0].mxu0 %v416
        %v707 = vpop.f32.mrb[0].mxu0
        %v708 = vadd.f32 0.0, %v707
        %v709 = vpop.f32.mrb[0].mxu0
        %v710 = vadd.f32 0.0, %v709
        %v711 = vpop.f32.mrb[0].mxu0
        %v712 = vadd.f32 0.0, %v711
        %v713 = vpop.f32.mrb[0].mxu0
        %v714 = vadd.f32 0.0, %v713
        %715 = vmatprep.mubr.bf16.mxu0 %v419
        %716 = vmatmul.mubr.bf16.gmra.mrb[0].mxu0 %v418
        %v717 = vpop.f32.mrb[0].mxu0
        %v718 = vadd.f32 0.0, %v717
        %v719 = vpop.f32.mrb[0].mxu0
        %v720 = vadd.f32 0.0, %v719
        %v721 = vpop.f32.mrb[0].mxu0
        %v722 = vadd.f32 0.0, %v721
        %v723 = vpop.f32.mrb[0].mxu0
        %v724 = vadd.f32 0.0, %v723
        %725 = vmatprep.mubr.bf16.mxu0 %v421
        %726 = vmatmul.mubr.bf16.gmra.mrb[0].mxu0 %v420
        %v727 = vpop.f32.mrb[0].mxu0
        %v728 = vadd.f32 0.0, %v727
        %v729 = vpop.f32.mrb[0].mxu0
        %v730 = vadd.f32 0.0, %v729
        %v731 = vpop.f32.mrb[0].mxu0
        %v732 = vadd.f32 0.0, %v731
        %v733 = vpop.f32.mrb[0].mxu0
        %v734 = vadd.f32 0.0, %v733
        %735 = vmatprep.mubr.bf16.mxu0 %v423
        %736 = vmatmul.mubr.bf16.gmra.mrb[0].mxu0 %v422
        %v737 = vpop.f32.mrb[0].mxu0
        %v738 = vadd.f32 0.0, %v737
        %v739 = vpop.f32.mrb[0].mxu0
        %v740 = vadd.f32 0.0, %v739
        %v741 = vpop.f32.mrb[0].mxu0
        %v742 = vadd.f32 0.0, %v741
        %v743 = vpop.f32.mrb[0].mxu0
        %v744 = vadd.f32 0.0, %v743
        %745 = vmatprep.mubr.bf16.mxu0 %v425
        %746 = vmatmul.mubr.bf16.gmra.mrb[0].mxu0 %v424
        %v747 = vpop.f32.mrb[0].mxu0
        %v748 = vadd.f32 0.0, %v747
        %v749 = vpop.f32.mrb[0].mxu0
        %v750 = vadd.f32 0.0, %v749
        %v751 = vpop.f32.mrb[0].mxu0
        %v752 = vadd.f32 0.0, %v751
        %v753 = vpop.f32.mrb[0].mxu0
        %v754 = vadd.f32 0.0, %v753
        %755 = vmatprep.mubr.bf16.mxu0 %v427
        %756 = vmatmul.mubr.bf16.gmra.mrb[0].mxu0 %v426
        %v757 = vpop.f32.mrb[0].mxu0
        %v758 = vadd.f32 0.0, %v757
        %v759 = vpop.f32.mrb[0].mxu0
        %v760 = vadd.f32 0.0, %v759
        %v761 = vpop.f32.mrb[0].mxu0
        %v762 = vadd.f32 0.0, %v761
        %v763 = vpop.f32.mrb[0].mxu0
        %v764 = vadd.f32 0.0, %v763
        %765 = vdwg.mxu0
        %v798 = vunpack.c.l.b16 %v428
        %v799 = vunpack.c.h.b16 %v428
        %v800 = vunpack.c.l.b16 %v429
        %v801 = vunpack.c.h.b16 %v429
        %v802 = vunpack.c.l.b16 %v430
        %v803 = vunpack.c.h.b16 %v430
        %v804 = vunpack.c.l.b16 %v431
        %v805 = vunpack.c.h.b16 %v431
        %v806 = vunpack.c.l.b16 %v432
        %v807 = vunpack.c.h.b16 %v432
        %v808 = vunpack.c.l.b16 %v433
        %v809 = vunpack.c.h.b16 %v433
        %v810 = vunpack.c.l.b16 %v434
        %v811 = vunpack.c.h.b16 %v434
        %v812 = vunpack.c.l.b16 %v435
        %v813 = vunpack.c.h.b16 %v435
        %v814 = vunpack.c.l.b16 %v436
        %v815 = vunpack.c.h.b16 %v436
        %v816 = vunpack.c.l.b16 %v437
        %v817 = vunpack.c.h.b16 %v437
        %v818 = vunpack.c.l.b16 %v438
        %v819 = vunpack.c.h.b16 %v438
        %v820 = vunpack.c.l.b16 %v439
        %v821 = vunpack.c.h.b16 %v439
        %v822 = vunpack.c.l.b16 %v440
        %v823 = vunpack.c.h.b16 %v440
        %v824 = vunpack.c.l.b16 %v441
        %v825 = vunpack.c.h.b16 %v441
        %v826 = vunpack.c.l.b16 %v442
        %v827 = vunpack.c.h.b16 %v442
        %v828 = vunpack.c.l.b16 %v443
        %v829 = vunpack.c.h.b16 %v443
        %v830 = vunpack.c.l.b16 %v444
        %v831 = vunpack.c.h.b16 %v444
        %v832 = vunpack.c.l.b16 %v445
        %v833 = vunpack.c.h.b16 %v445
        %v834 = vunpack.c.l.b16 %v446
        %v835 = vunpack.c.h.b16 %v446
        %v836 = vunpack.c.l.b16 %v447
        %v837 = vunpack.c.h.b16 %v447
        %v838 = vunpack.c.l.b16 %v448
        %v839 = vunpack.c.h.b16 %v448
        %v840 = vunpack.c.l.b16 %v449
        %v841 = vunpack.c.h.b16 %v449
        %v842 = vunpack.c.l.b16 %v450
        %v843 = vunpack.c.h.b16 %v450
        %v844 = vunpack.c.l.b16 %v451
        %v845 = vunpack.c.h.b16 %v451
        %v846 = vunpack.c.l.b16 %v452
        %v847 = vunpack.c.h.b16 %v452
        %v848 = vunpack.c.l.b16 %v453
        %v849 = vunpack.c.h.b16 %v453
        %v850 = vunpack.c.l.b16 %v454
        %v851 = vunpack.c.h.b16 %v454
        %v852 = vunpack.c.l.b16 %v455
        %v853 = vunpack.c.h.b16 %v455
        %v854 = vunpack.c.l.b16 %v456
        %v855 = vunpack.c.h.b16 %v456
        %v856 = vunpack.c.l.b16 %v457
        %v857 = vunpack.c.h.b16 %v457
        %v858 = vunpack.c.l.b16 %v458
        %v859 = vunpack.c.h.b16 %v458
        %v860 = vunpack.c.l.b16 %v459
        %v861 = vunpack.c.h.b16 %v459
        %v862 = vpack.c.b16 %v800, %v798
        %v863 = vpack.c.b16 %v801, %v799
        %v864 = vpack.c.b16 %v804, %v802
        %v865 = vpack.c.b16 %v805, %v803
        %v866 = vpack.c.b16 %v808, %v806
        %v867 = vpack.c.b16 %v809, %v807
        %v868 = vpack.c.b16 %v812, %v810
        %v869 = vpack.c.b16 %v813, %v811
        %v870 = vpack.c.b16 %v816, %v814
        %v871 = vpack.c.b16 %v817, %v815
        %v872 = vpack.c.b16 %v820, %v818
        %v873 = vpack.c.b16 %v821, %v819
        %v874 = vpack.c.b16 %v824, %v822
        %v875 = vpack.c.b16 %v825, %v823
        %v876 = vpack.c.b16 %v828, %v826
        %v877 = vpack.c.b16 %v829, %v827
        %v878 = vpack.c.b16 %v832, %v830
        %v879 = vpack.c.b16 %v833, %v831
        %v880 = vpack.c.b16 %v836, %v834
        %v881 = vpack.c.b16 %v837, %v835
        %v882 = vpack.c.b16 %v840, %v838
        %v883 = vpack.c.b16 %v841, %v839
        %v884 = vpack.c.b16 %v844, %v842
        %v885 = vpack.c.b16 %v845, %v843
        %v886 = vpack.c.b16 %v848, %v846
        %v887 = vpack.c.b16 %v849, %v847
        %v888 = vpack.c.b16 %v852, %v850
        %v889 = vpack.c.b16 %v853, %v851
        %v890 = vpack.c.b16 %v856, %v854
        %v891 = vpack.c.b16 %v857, %v855
        %v892 = vpack.c.b16 %v860, %v858
        %v893 = vpack.c.b16 %v861, %v859
        %926 = vmatprep.subr.bf16.mxu0 %v863
        %927 = vmatpush1.bf16.msra.mxu0 %v862
        %928 = vmatprep.subr.bf16.mxu0 %v865
        %929 = vmatpush1.bf16.msra.mxu0 %v864
        %930 = vmatprep.subr.bf16.mxu0 %v867
        %931 = vmatpush1.bf16.msra.mxu0 %v866
        %932 = vmatprep.subr.bf16.mxu0 %v869
        %933 = vmatpush1.bf16.msra.mxu0 %v868
        %934 = vmatprep.subr.bf16.mxu0 %v871
        %935 = vmatpush1.bf16.msra.mxu0 %v870
        %936 = vmatprep.subr.bf16.mxu0 %v873
        %937 = vmatpush1.bf16.msra.mxu0 %v872
        %938 = vmatprep.subr.bf16.mxu0 %v875
        %939 = vmatpush1.bf16.msra.mxu0 %v874
        %940 = vmatprep.subr.bf16.mxu0 %v877
        %941 = vmatpush1.bf16.msra.mxu0 %v876
        %942 = vmatprep.subr.bf16.mxu0 %v879
        %943 = vmatpush1.bf16.msra.mxu0 %v878
        %944 = vmatprep.subr.bf16.mxu0 %v881
        %945 = vmatpush1.bf16.msra.mxu0 %v880
        %946 = vmatprep.subr.bf16.mxu0 %v883
        %947 = vmatpush1.bf16.msra.mxu0 %v882
        %948 = vmatprep.subr.bf16.mxu0 %v885
        %949 = vmatpush1.bf16.msra.mxu0 %v884
        %950 = vmatprep.subr.bf16.mxu0 %v887
        %951 = vmatpush1.bf16.msra.mxu0 %v886
        %952 = vmatprep.subr.bf16.mxu0 %v889
        %953 = vmatpush1.bf16.msra.mxu0 %v888
        %954 = vmatprep.subr.bf16.mxu0 %v891
        %955 = vmatpush1.bf16.msra.mxu0 %v890
        %956 = vmatprep.subr.bf16.mxu0 %v893
        %957 = vmatpush1.bf16.msra.mxu0 %v892
        %958 = vmatprep.mubr.bf16.mxu0 %v365
        %959 = vmatmul.mubr.bf16.gmra.mrb[0].mxu0 %v364
        %v960 = vpop.f32.mrb[0].mxu0
        %v961 = vadd.f32 %v688, %v960
        %v962 = vpop.f32.mrb[0].mxu0
        %v963 = vadd.f32 %v690, %v962
        %v964 = vpop.f32.mrb[0].mxu0
        %v965 = vadd.f32 %v692, %v964
        %v966 = vpop.f32.mrb[0].mxu0
        %v967 = vadd.f32 %v694, %v966
        %968 = vmatprep.mubr.bf16.mxu0 %v367
        %969 = vmatmul.mubr.bf16.gmra.mrb[0].mxu0 %v366
        %v970 = vpop.f32.mrb[0].mxu0
        %v971 = vadd.f32 %v698, %v970
        %v972 = vpop.f32.mrb[0].mxu0
        %v973 = vadd.f32 %v700, %v972
        %v974 = vpop.f32.mrb[0].mxu0
        %v975 = vadd.f32 %v702, %v974
        %v976 = vpop.f32.mrb[0].mxu0
        %v977 = vadd.f32 %v704, %v976
        %978 = vmatprep.mubr.bf16.mxu0 %v369
        %979 = vmatmul.mubr.bf16.gmra.mrb[0].mxu0 %v368
        %v980 = vpop.f32.mrb[0].mxu0
        %v981 = vadd.f32 %v708, %v980
        %v982 = vpop.f32.mrb[0].mxu0
        %v983 = vadd.f32 %v710, %v982
        %v984 = vpop.f32.mrb[0].mxu0
        %v985 = vadd.f32 %v712, %v984
        %v986 = vpop.f32.mrb[0].mxu0
        %v987 = vadd.f32 %v714, %v986
        %988 = vmatprep.mubr.bf16.mxu0 %v371
        %989 = vmatmul.mubr.bf16.gmra.mrb[0].mxu0 %v370
        %v990 = vpop.f32.mrb[0].mxu0
        %v991 = vadd.f32 %v718, %v990
        %v992 = vpop.f32.mrb[0].mxu0
        %v993 = vadd.f32 %v720, %v992
        %v994 = vpop.f32.mrb[0].mxu0
        %v995 = vadd.f32 %v722, %v994
        %v996 = vpop.f32.mrb[0].mxu0
        %v997 = vadd.f32 %v724, %v996
        %998 = vmatprep.mubr.bf16.mxu0 %v373
        %999 = vmatmul.mubr.bf16.gmra.mrb[0].mxu0 %v372
        %v1000 = vpop.f32.mrb[0].mxu0
        %v1001 = vadd.f32 %v728, %v1000
        %v1002 = vpop.f32.mrb[0].mxu0
        %v1003 = vadd.f32 %v730, %v1002
        %v1004 = vpop.f32.mrb[0].mxu0
        %v1005 = vadd.f32 %v732, %v1004
        %v1006 = vpop.f32.mrb[0].mxu0
        %v1007 = vadd.f32 %v734, %v1006
        %1008 = vmatprep.mubr.bf16.mxu0 %v375
        %1009 = vmatmul.mubr.bf16.gmra.mrb[0].mxu0 %v374
        %v1010 = vpop.f32.mrb[0].mxu0
        %v1011 = vadd.f32 %v738, %v1010
        %v1012 = vpop.f32.mrb[0].mxu0
        %v1013 = vadd.f32 %v740, %v1012
        %v1014 = vpop.f32.mrb[0].mxu0
        %v1015 = vadd.f32 %v742, %v1014
        %v1016 = vpop.f32.mrb[0].mxu0
        %v1017 = vadd.f32 %v744, %v1016
        %1018 = vmatprep.mubr.bf16.mxu0 %v377
        %1019 = vmatmul.mubr.bf16.gmra.mrb[0].mxu0 %v376
        %v1020 = vpop.f32.mrb[0].mxu0
        %v1021 = vadd.f32 %v748, %v1020
        %v1022 = vpop.f32.mrb[0].mxu0
        %v1023 = vadd.f32 %v750, %v1022
        %v1024 = vpop.f32.mrb[0].mxu0
        %v1025 = vadd.f32 %v752, %v1024
        %v1026 = vpop.f32.mrb[0].mxu0
        %v1027 = vadd.f32 %v754, %v1026
        %1028 = vmatprep.mubr.bf16.mxu0 %v379
        %1029 = vmatmul.mubr.bf16.gmra.mrb[0].mxu0 %v378
        %v1030 = vpop.f32.mrb[0].mxu0
        %v1031 = vadd.f32 %v758, %v1030
        %v1032 = vpop.f32.mrb[0].mxu0
        %v1033 = vadd.f32 %v760, %v1032
        %v1034 = vpop.f32.mrb[0].mxu0
        %v1035 = vadd.f32 %v762, %v1034
        %v1036 = vpop.f32.mrb[0].mxu0
        %v1037 = vadd.f32 %v764, %v1036
        %1038 = vdwg.mxu0
        %v1039 = vld [vmem:[%s3] sm:$0x3]
        %v1041 = vlaneseq
        %v1042 = vshrl.u32 %v1041, 7
        %v1043 = vsub.s32 0, %v1042
        %v1044 = vrot.slane %v1039, %v1043
        %v1045 = vlaneseq
        %v1046 = vshrl.u32 %v1045, 7
        %v1047 = vsub.s32 1, %v1046
        %v1048 = vrot.slane %v1039, %v1047
        %v1051 = vadd.f32 %v961, %v1044
        %v1052 = vadd.f32 %v963, %v1048
        %v1053 = vadd.f32 %v965, %v1044
        %v1054 = vadd.f32 %v967, %v1048
        %v1055 = vadd.f32 %v971, %v1044
        %v1056 = vadd.f32 %v973, %v1048
        %v1057 = vadd.f32 %v975, %v1044
        %v1058 = vadd.f32 %v977, %v1048
        %v1059 = vadd.f32 %v981, %v1044
        %v1060 = vadd.f32 %v983, %v1048
        %v1061 = vadd.f32 %v985, %v1044
        %v1062 = vadd.f32 %v987, %v1048
        %v1063 = vadd.f32 %v991, %v1044
        %v1064 = vadd.f32 %v993, %v1048
        %v1065 = vadd.f32 %v995, %v1044
        %v1066 = vadd.f32 %v997, %v1048
        %v1067 = vadd.f32 %v1001, %v1044
        %v1068 = vadd.f32 %v1003, %v1048
        %v1069 = vadd.f32 %v1005, %v1044
        %v1070 = vadd.f32 %v1007, %v1048
        %v1071 = vadd.f32 %v1011, %v1044
        %v1072 = vadd.f32 %v1013, %v1048
        %v1073 = vadd.f32 %v1015, %v1044
        %v1074 = vadd.f32 %v1017, %v1048
        %v1075 = vadd.f32 %v1021, %v1044
        %v1076 = vadd.f32 %v1023, %v1048
        %v1077 = vadd.f32 %v1025, %v1044
        %v1078 = vadd.f32 %v1027, %v1048
        %v1079 = vadd.f32 %v1031, %v1044
        %v1080 = vadd.f32 %v1033, %v1048
        %v1081 = vadd.f32 %v1035, %v1044
        %v1082 = vadd.f32 %v1037, %v1048
        %v1083 = vmax.f32 %v1051, 0.0
        %v1084 = vmax.f32 %v1052, 0.0
        %v1085 = vmax.f32 %v1053, 0.0
        %v1086 = vmax.f32 %v1054, 0.0
        %v1087 = vmax.f32 %v1055, 0.0
        %v1088 = vmax.f32 %v1056, 0.0
        %v1089 = vmax.f32 %v1057, 0.0
        %v1090 = vmax.f32 %v1058, 0.0
        %v1091 = vmax.f32 %v1059, 0.0
        %v1092 = vmax.f32 %v1060, 0.0
        %v1093 = vmax.f32 %v1061, 0.0
        %v1094 = vmax.f32 %v1062, 0.0
        %v1095 = vmax.f32 %v1063, 0.0
        %v1096 = vmax.f32 %v1064, 0.0
        %v1097 = vmax.f32 %v1065, 0.0
        %v1098 = vmax.f32 %v1066, 0.0
        %v1099 = vmax.f32 %v1067, 0.0
        %v1100 = vmax.f32 %v1068, 0.0
        %v1101 = vmax.f32 %v1069, 0.0
        %v1102 = vmax.f32 %v1070, 0.0
        %v1103 = vmax.f32 %v1071, 0.0
        %v1104 = vmax.f32 %v1072, 0.0
        %v1105 = vmax.f32 %v1073, 0.0
        %v1106 = vmax.f32 %v1074, 0.0
        %v1107 = vmax.f32 %v1075, 0.0
        %v1108 = vmax.f32 %v1076, 0.0
        %v1109 = vmax.f32 %v1077, 0.0
        %v1110 = vmax.f32 %v1078, 0.0
        %v1111 = vmax.f32 %v1079, 0.0
        %v1112 = vmax.f32 %v1080, 0.0
        %v1113 = vmax.f32 %v1081, 0.0
        %v1114 = vmax.f32 %v1082, 0.0
        %v1115 = vld [vmem:[%s4] sm:$0x3]
        %v1117 = vlaneseq
        %v1118 = vshrl.u32 %v1117, 7
        %v1119 = vsub.s32 0, %v1118
        %v1120 = vrot.slane %v1115, %v1119
        %v1121 = vlaneseq
        %v1122 = vshrl.u32 %v1121, 7
        %v1123 = vsub.s32 1, %v1122
        %v1124 = vrot.slane %v1115, %v1123
        %v1127 = vmul.f32 %v1083, %v1120
        %v1128 = vmul.f32 %v1084, %v1124
        %v1129 = vmul.f32 %v1085, %v1120
        %v1130 = vmul.f32 %v1086, %v1124
        %v1131 = vmul.f32 %v1087, %v1120
        %v1132 = vmul.f32 %v1088, %v1124
        %v1133 = vmul.f32 %v1089, %v1120
        %v1134 = vmul.f32 %v1090, %v1124
        %v1135 = vmul.f32 %v1091, %v1120
        %v1136 = vmul.f32 %v1092, %v1124
        %v1137 = vmul.f32 %v1093, %v1120
        %v1138 = vmul.f32 %v1094, %v1124
        %v1139 = vmul.f32 %v1095, %v1120
        %v1140 = vmul.f32 %v1096, %v1124
        %v1141 = vmul.f32 %v1097, %v1120
        %v1142 = vmul.f32 %v1098, %v1124
        %v1143 = vmul.f32 %v1099, %v1120
        %v1144 = vmul.f32 %v1100, %v1124
        %v1145 = vmul.f32 %v1101, %v1120
        %v1146 = vmul.f32 %v1102, %v1124
        %v1147 = vmul.f32 %v1103, %v1120
        %v1148 = vmul.f32 %v1104, %v1124
        %v1149 = vmul.f32 %v1105, %v1120
        %v1150 = vmul.f32 %v1106, %v1124
        %v1151 = vmul.f32 %v1107, %v1120
        %v1152 = vmul.f32 %v1108, %v1124
        %v1153 = vmul.f32 %v1109, %v1120
        %v1154 = vmul.f32 %v1110, %v1124
        %v1155 = vmul.f32 %v1111, %v1120
        %v1156 = vmul.f32 %v1112, %v1124
        %v1157 = vmul.f32 %v1113, %v1120
        %v1158 = vmul.f32 %v1114, %v1124
        %v1159 = vadd.f32 %v1127, %v1128
        %1160 = vadd.xlane.f32.xlu0 %v1159
        %v1161 = vpop.xlane.xlu0 %1160
        %v1162 = vadd.f32 %v1129, %v1130
        %1163 = vadd.xlane.f32.xlu0 %v1162
        %v1164 = vpop.xlane.xlu0 %1163
        %v1165 = vadd.f32 %v1131, %v1132
        %1166 = vadd.xlane.f32.xlu0 %v1165
        %v1167 = vpop.xlane.xlu0 %1166
        %v1168 = vadd.f32 %v1133, %v1134
        %1169 = vadd.xlane.f32.xlu0 %v1168
        %v1170 = vpop.xlane.xlu0 %1169
        %v1171 = vadd.f32 %v1135, %v1136
        %1172 = vadd.xlane.f32.xlu0 %v1171
        %v1173 = vpop.xlane.xlu0 %1172
        %v1174 = vadd.f32 %v1137, %v1138
        %1175 = vadd.xlane.f32.xlu0 %v1174
        %v1176 = vpop.xlane.xlu0 %1175
        %v1177 = vadd.f32 %v1139, %v1140
        %1178 = vadd.xlane.f32.xlu0 %v1177
        %v1179 = vpop.xlane.xlu0 %1178
        %v1180 = vadd.f32 %v1141, %v1142
        %1181 = vadd.xlane.f32.xlu0 %v1180
        %v1182 = vpop.xlane.xlu0 %1181
        %v1183 = vadd.f32 %v1143, %v1144
        %1184 = vadd.xlane.f32.xlu0 %v1183
        %v1185 = vpop.xlane.xlu0 %1184
        %v1186 = vadd.f32 %v1145, %v1146
        %1187 = vadd.xlane.f32.xlu0 %v1186
        %v1188 = vpop.xlane.xlu0 %1187
        %v1189 = vadd.f32 %v1147, %v1148
        %1190 = vadd.xlane.f32.xlu0 %v1189
        %v1191 = vpop.xlane.xlu0 %1190
        %v1192 = vadd.f32 %v1149, %v1150
        %1193 = vadd.xlane.f32.xlu0 %v1192
        %v1194 = vpop.xlane.xlu0 %1193
        %v1195 = vadd.f32 %v1151, %v1152
        %1196 = vadd.xlane.f32.xlu0 %v1195
        %v1197 = vpop.xlane.xlu0 %1196
        %v1198 = vadd.f32 %v1153, %v1154
        %1199 = vadd.xlane.f32.xlu0 %v1198
        %v1200 = vpop.xlane.xlu0 %1199
        %v1201 = vadd.f32 %v1155, %v1156
        %1202 = vadd.xlane.f32.xlu0 %v1201
        %v1203 = vpop.xlane.xlu0 %1202
        %v1204 = vadd.f32 %v1157, %v1158
        %1205 = vadd.xlane.f32.xlu0 %v1204
        %v1206 = vpop.xlane.xlu0 %1205
        %s1207 = sld [smem:[#allocation2]]
        %v1208 = vstv %s1207
        %v1209 = vadd.f32 %v1161, %v1208
        %v1210 = vadd.f32 %v1164, %v1208
        %v1211 = vadd.f32 %v1167, %v1208
        %v1212 = vadd.f32 %v1170, %v1208
        %v1213 = vadd.f32 %v1173, %v1208
        %v1214 = vadd.f32 %v1176, %v1208
        %v1215 = vadd.f32 %v1179, %v1208
        %v1216 = vadd.f32 %v1182, %v1208
        %v1217 = vadd.f32 %v1185, %v1208
        %v1218 = vadd.f32 %v1188, %v1208
        %v1219 = vadd.f32 %v1191, %v1208
        %v1220 = vadd.f32 %v1194, %v1208
        %v1221 = vadd.f32 %v1197, %v1208
        %v1222 = vadd.f32 %v1200, %v1208
        %v1223 = vadd.f32 %v1203, %v1208
        %v1224 = vadd.f32 %v1206, %v1208
        %v1225 = vxor.u32 %v1209, 2147483648
        %v1226 = vxor.u32 %v1210, 2147483648
        %v1227 = vxor.u32 %v1211, 2147483648
        %v1228 = vxor.u32 %v1212, 2147483648
        %v1229 = vxor.u32 %v1213, 2147483648
        %v1230 = vxor.u32 %v1214, 2147483648
        %v1231 = vxor.u32 %v1215, 2147483648
        %v1232 = vxor.u32 %v1216, 2147483648
        %v1233 = vxor.u32 %v1217, 2147483648
        %v1234 = vxor.u32 %v1218, 2147483648
        %v1235 = vxor.u32 %v1219, 2147483648
        %v1236 = vxor.u32 %v1220, 2147483648
        %v1237 = vxor.u32 %v1221, 2147483648
        %v1238 = vxor.u32 %v1222, 2147483648
        %v1239 = vxor.u32 %v1223, 2147483648
        %v1240 = vxor.u32 %v1224, 2147483648
        %v1241 = vmul.f32 %v1225, 1.442695
        %v1242 = vpow.pop %v1241
        %v1243 = vmul.f32 %v1226, 1.442695
        %v1244 = vpow.pop %v1243
        %v1245 = vmul.f32 %v1227, 1.442695
        %v1246 = vpow.pop %v1245
        %v1247 = vmul.f32 %v1228, 1.442695
        %v1248 = vpow.pop %v1247
        %v1249 = vmul.f32 %v1229, 1.442695
        %v1250 = vpow.pop %v1249
        %v1251 = vmul.f32 %v1230, 1.442695
        %v1252 = vpow.pop %v1251
        %v1253 = vmul.f32 %v1231, 1.442695
        %v1254 = vpow.pop %v1253
        %v1255 = vmul.f32 %v1232, 1.442695
        %v1256 = vpow.pop %v1255
        %v1257 = vmul.f32 %v1233, 1.442695
        %v1258 = vpow.pop %v1257
        %v1259 = vmul.f32 %v1234, 1.442695
        %v1260 = vpow.pop %v1259
        %v1261 = vmul.f32 %v1235, 1.442695
        %v1262 = vpow.pop %v1261
        %v1263 = vmul.f32 %v1236, 1.442695
        %v1264 = vpow.pop %v1263
        %v1265 = vmul.f32 %v1237, 1.442695
        %v1266 = vpow.pop %v1265
        %v1267 = vmul.f32 %v1238, 1.442695
        %v1268 = vpow.pop %v1267
        %v1269 = vmul.f32 %v1239, 1.442695
        %v1270 = vpow.pop %v1269
        %v1271 = vmul.f32 %v1240, 1.442695
        %v1272 = vpow.pop %v1271
        %v1273 = vadd.f32 %v1242, 1.0
        %v1274 = vadd.f32 %v1244, 1.0
        %v1275 = vadd.f32 %v1246, 1.0
        %v1276 = vadd.f32 %v1248, 1.0
        %v1277 = vadd.f32 %v1250, 1.0
        %v1278 = vadd.f32 %v1252, 1.0
        %v1279 = vadd.f32 %v1254, 1.0
        %v1280 = vadd.f32 %v1256, 1.0
        %v1281 = vadd.f32 %v1258, 1.0
        %v1282 = vadd.f32 %v1260, 1.0
        %v1283 = vadd.f32 %v1262, 1.0
        %v1284 = vadd.f32 %v1264, 1.0
        %v1285 = vadd.f32 %v1266, 1.0
        %v1286 = vadd.f32 %v1268, 1.0
        %v1287 = vadd.f32 %v1270, 1.0
        %v1288 = vadd.f32 %v1272, 1.0
        %v1289 = vrcp.pop %v1273
        %v1290 = vmul.f32 1.0, %v1289
        %v1291 = vrcp.pop %v1274
        %v1292 = vmul.f32 1.0, %v1291
        %v1293 = vrcp.pop %v1275
        %v1294 = vmul.f32 1.0, %v1293
        %v1295 = vrcp.pop %v1276
        %v1296 = vmul.f32 1.0, %v1295
        %v1297 = vrcp.pop %v1277
        %v1298 = vmul.f32 1.0, %v1297
        %v1299 = vrcp.pop %v1278
        %v1300 = vmul.f32 1.0, %v1299
        %v1301 = vrcp.pop %v1279
        %v1302 = vmul.f32 1.0, %v1301
        %v1303 = vrcp.pop %v1280
        %v1304 = vmul.f32 1.0, %v1303
        %v1305 = vrcp.pop %v1281
        %v1306 = vmul.f32 1.0, %v1305
        %v1307 = vrcp.pop %v1282
        %v1308 = vmul.f32 1.0, %v1307
        %v1309 = vrcp.pop %v1283
        %v1310 = vmul.f32 1.0, %v1309
        %v1311 = vrcp.pop %v1284
        %v1312 = vmul.f32 1.0, %v1311
        %v1313 = vrcp.pop %v1285
        %v1314 = vmul.f32 1.0, %v1313
        %v1315 = vrcp.pop %v1286
        %v1316 = vmul.f32 1.0, %v1315
        %v1317 = vrcp.pop %v1287
        %v1318 = vmul.f32 1.0, %v1317
        %v1319 = vrcp.pop %v1288
        %v1320 = vmul.f32 1.0, %v1319
        %vm1321 = vcmask 7168
        %1322 = vst.msk [vmem:[%s330] sm:$0xff] %vm1321, %v1290
        %1323 = vst.msk [vmem:[%s330 + $0x8] sm:$0xff] %vm1321, %v1292
        %1324 = vst.msk [vmem:[%s330 + $0x10] sm:$0xff] %vm1321, %v1294
        %1325 = vst.msk [vmem:[%s330 + $0x18] sm:$0xff] %vm1321, %v1296
        %1326 = vst.msk [vmem:[%s330 + $0x20] sm:$0xff] %vm1321, %v1298
        %1327 = vst.msk [vmem:[%s330 + $0x28] sm:$0xff] %vm1321, %v1300
        %1328 = vst.msk [vmem:[%s330 + $0x30] sm:$0xff] %vm1321, %v1302
        %1329 = vst.msk [vmem:[%s330 + $0x38] sm:$0xff] %vm1321, %v1304
        %1330 = vst.msk [vmem:[%s330 + $0x40] sm:$0xff] %vm1321, %v1306
        %1331 = vst.msk [vmem:[%s330 + $0x48] sm:$0xff] %vm1321, %v1308
        %1332 = vst.msk [vmem:[%s330 + $0x50] sm:$0xff] %vm1321, %v1310
        %1333 = vst.msk [vmem:[%s330 + $0x58] sm:$0xff] %vm1321, %v1312
        %1334 = vst.msk [vmem:[%s330 + $0x60] sm:$0xff] %vm1321, %v1314
        %1335 = vst.msk [vmem:[%s330 + $0x68] sm:$0xff] %vm1321, %v1316
        %1336 = vst.msk [vmem:[%s330 + $0x70] sm:$0xff] %vm1321, %v1318
        %1337 = vst.msk [vmem:[%s330 + $0x78] sm:$0xff] %vm1321, %v1320
        %s1338 = smul.u32 16, %s24
        %p1339 = scmp.lt.s32.totalorder %s1338, 63
        %s1340 = scalar_select %p1339, %s1338, 63
        %s1341 = smul.addr %s1340, 8
        %s1342 = scalar_lea.vmem %s6, %s1341
        // Predicated region
        $region57: #{tpu_custom_call.1} parent=43 // pred_check
          %p1343 = pneg %p178
        $region58: #{tpu_custom_call.1} parent=43 // pred_check_branch
          %1345 = sbr.rel (%p1343) target = $region60
        $region59: #{tpu_custom_call.1} parent=43 // pred_region
          %s1346 = smul.u32 16, %s24
        $region60: #{tpu_custom_call.1} parent=43 // pred_fallthru
          _
      $region44: #{tpu_custom_call.1} parent=5 // pred_fallthru
        _
      %p1347 = scmp.le.s32.totalorder 2, %s19
      // Predicated region
      $region61: #{tpu_custom_call.1} parent=5 // pred_check
        %p1348 = pneg %p1347
      $region62: #{tpu_custom_call.1} parent=5 // pred_check_branch
        %1350 = sbr.rel (%p1348) target = $region64
      $region63: #{tpu_custom_call.1} parent=5 // pred_region
        %s1351 = ssub.s32 %s19, 2
        // Predicated region
        $region65: #{tpu_custom_call.1} parent=63 // pred_check
          %p1352 = pneg %p184
        $region66: #{tpu_custom_call.1} parent=63 // pred_check_branch
          %1354 = sbr.rel (%p1352) target = $region68
        $region67: #{tpu_custom_call.1} parent=63 // pred_region
          %s1355 = smul.u32 16, %s25
          %p1356 = scmp.lt.s32.totalorder %s1355, 63
          %s1357 = scalar_select %p1356, %s1355, 63
          %s1358 = smul.addr %s1357, 8
          %s1359 = scalar_lea.vmem %s6, %s1358
        $region68: #{tpu_custom_call.1} parent=63 // pred_fallthru
          _
      $region64: #{tpu_custom_call.1} parent=5 // pred_fallthru
        _
    $region6: #{tpu_custom_call.1} parent=1 // loop_footer
      %s23 = sadd.s32 1, %s19
    $region7: #{tpu_custom_call.1} parent=1 // loop_footer_branch
      %18 = sbr.rel target = $region3
    $region8: #{tpu_custom_call.1} parent=1 // loop_exit
      _
    %1360 = vsyncpa [#allocation4], 1
    %s1361 = scalar_lea.sflag [#allocation4], 1
    %1362 = vsyncpa %s1361, 1
    %1363 = vsyncpa [#allocation6], 1
    %s1364 = scalar_lea.sflag [#allocation6], 1
    %1365 = vsyncpa %s1364, 1

// kernel: tpu_custom_call.1
$region0: #{tpu_custom_call.1}
  #allocation0 [shape = 'u32[]', space=smem, size = 0x4, offset = 0x4, fixed_abs, tag = 'smem constant byte address 0x4 - core index']
  #allocation1 [shape = 'u32[144,128]{1,0:T(1,128)}', space=vmem, size = 0x12000, scoped, tag = 'internal scratch']
  #allocation2 [shape = 'f32[1,1]{1,0:T(1,128)S(6)}', space=smem, size = 0x200, scoped, tag = 'scoped memory for tpu_custom_call.1']
  %s0 = inlined_call_operand.hbm [shape: f32[512,256], index: 0, kind: input, shape index: {}]
  %s1 = inlined_call_operand.hbm [shape: f32[512,256], index: 1, kind: input, shape index: {}]
  %s2 = inlined_call_operand.hbm [shape: bf16[2,256,256], index: 2, kind: input, shape index: {}]
  %s3 = inlined_call_operand.vmem [shape: f32[1,256], index: 3, kind: input, shape index: {}]
  %s4 = inlined_call_operand.vmem [shape: f32[1,256], index: 4, kind: input, shape index: {}]
  %s5 = inlined_call_operand.<no memory space> [shape: f32[1,1], index: 5, kind: input, shape index: {}]
  %s6 = inlined_call_operand.vmem [shape: f32[512,1], index: 6, kind: output, shape index: {}]
  %s7 = sld [smem:[#allocation0]]
  $region69: #{tpu_custom_call.1} parent=0
    _
  %s9 = ssub.s32 1, %s7
  %s10 = scalar_select 0, %s9, %s7
  %11 = sst [smem:[#allocation2]] %s5
  $region1: #{tpu_custom_call.1} parent=0
    #allocation3 [shape = 'u8[262144]{0}', space=vmem, size = 0x40000, scoped, tag = 'input window, operand 0']
    #allocation4 [shape = 's32[2]{0}', space=sflag, size = 0x8, scoped, tag = 'scoped memory for tpu_custom_call.1']
    #allocation5 [shape = 'u8[262144]{0}', space=vmem, size = 0x40000, scoped, tag = 'input window, operand 1']
    #allocation6 [shape = 's32[2]{0}', space=sflag, size = 0x8, scoped, tag = 'scoped memory for tpu_custom_call.1']
    #allocation7 [shape = 'u8[262144]{0}', space=vmem, size = 0x40000, scoped, tag = 'input window, operand 2, single buffered']
    %12 = vsyncpa [#allocation4], 0
    %s13 = scalar_lea.sflag [#allocation4], 1
    %14 = vsyncpa %s13, 0
    %15 = vsyncpa [#allocation6], 0
    %s16 = scalar_lea.sflag [#allocation6], 1
    %17 = vsyncpa %s16, 0
    loop: start=0, step=1, limit=6
    $region2: #{tpu_custom_call.1} parent=1 // loop_pre_header
      _
    $region3: #{tpu_custom_call.1} parent=1 // loop_header
      %s19 = sphi 0, %s23
      %p20 = scmp.ge.s32.totalorder %s19, 6
      %s29 = sphi 0, %s31
      %s32 = sphi 0, %s29
      %s33 = sphi 0, %s32
      %s49 = sphi 0, %s33
      %s55 = sphi 0, %s57
      %s58 = sphi 0, %s55
      %s59 = sphi 0, %s58
      %s75 = sphi 0, %s59
      %s79 = sphi 0, %s79
      %s81 = sphi 0, %s79
      %s82 = sphi 0, %s81
      %s96 = sphi 0, %s82
      %s100 = sphi 0, %s100
      %s102 = sphi 0, %s100
      %s103 = sphi 0, %s102
      %s117 = sphi 0, %s103
      %s121 = sphi 0, %s121
      %s123 = sphi 0, %s121
      %s124 = sphi 0, %s123
      %s138 = sphi 0, %s124
      %s142 = sphi 0, %s142
      %s144 = sphi 0, %s142
      %s145 = sphi 0, %s144
      %s159 = sphi 0, %s145
      %s165 = sphi 0, %s167
      %s168 = sphi 0, %s165
      %s169 = sphi 0, %s168
      %s185 = sphi 0, %s169
    $region4: #{tpu_custom_call.1} parent=1 // loop_header_branch
      %22 = sbr.rel (%p20) target = $region8
    $region5: #{tpu_custom_call.1} parent=1 // loop_body
      %s24 = ssub.s32 %s19, 1
      %s25 = ssub.s32 %s19, 2
      %s26 = sadd.s32 %s19, 1
      %s27 = ssub.s32 %s19, %s26
      %p28 = scmp.eq.s32.totalorder %s27, 0
      %s30 = sadd.s32 %s29, 1
      %s31 = scalar_select %p28, %s29, %s30
      %p34 = pneg %p28
      %p35 = scmp.eq.s32.totalorder %s19, 3
      %p36 = por %p34, %p35
      %p37 = scmp.ne.s32.totalorder %s29, %s32
      %p38 = scmp.eq.s32.totalorder %s19, 0
      %p39 = por %p37, %p38
      %p40 = scmp.ne.s32.totalorder %s29, %s32
      %p41 = scmp.eq.s32.totalorder %s24, 3
      %p42 = por %p40, %p41
      %p43 = scmp.ne.s32.totalorder %s32, %s33
      %p44 = scmp.eq.s32.totalorder %s24, 0
      %p45 = por %p43, %p44
      %p46 = scmp.ne.s32.totalorder %s32, %s33
      %p47 = scmp.eq.s32.totalorder %s25, 3
      %p48 = por %p46, %p47
      %p50 = scmp.ne.s32.totalorder %s33, %s49
      %p51 = scmp.eq.s32.totalorder %s25, 0
      %p52 = por %p50, %p51
      %s53 = ssub.s32 %s19, %s26
      %p54 = scmp.eq.s32.totalorder %s53, 0
      %s56 = sadd.s32 %s55, 1
      %s57 = scalar_select %p54, %s55, %s56
      %p60 = pneg %p54
      %p61 = scmp.eq.s32.totalorder %s19, 3
      %p62 = por %p60, %p61
      %p63 = scmp.ne.s32.totalorder %s55, %s58
      %p64 = scmp.eq.s32.totalorder %s19, 0
      %p65 = por %p63, %p64
      %p66 = scmp.ne.s32.totalorder %s55, %s58
      %p67 = scmp.eq.s32.totalorder %s24, 3
      %p68 = por %p66, %p67
      %p69 = scmp.ne.s32.totalorder %s58, %s59
      %p70 = scmp.eq.s32.totalorder %s24, 0
      %p71 = por %p69, %p70
      %p72 = scmp.ne.s32.totalorder %s58, %s59
      %p73 = scmp.eq.s32.totalorder %s25, 3
      %p74 = por %p72, %p73
      %p76 = scmp.ne.s32.totalorder %s59, %s75
      %p77 = scmp.eq.s32.totalorder %s25, 0
      %p78 = por %p76, %p77
      %s80 = sadd.s32 %s79, 1
      %p83 = scmp.eq.s32.totalorder %s19, 3
      %p84 = scmp.ne.s32.totalorder %s79, %s81
      %p85 = scmp.eq.s32.totalorder %s19, 0
      %p86 = por %p84, %p85
      %p87 = scmp.ne.s32.totalorder %s79, %s81
      %p88 = scmp.eq.s32.totalorder %s24, 3
      %p89 = por %p87, %p88
      %p90 = scmp.ne.s32.totalorder %s81, %s82
      %p91 = scmp.eq.s32.totalorder %s24, 0
      %p92 = por %p90, %p91
      %p93 = scmp.ne.s32.totalorder %s81, %s82
      %p94 = scmp.eq.s32.totalorder %s25, 3
      %p95 = por %p93, %p94
      %p97 = scmp.ne.s32.totalorder %s82, %s96
      %p98 = scmp.eq.s32.totalorder %s25, 0
      %p99 = por %p97, %p98
      %s101 = sadd.s32 %s100, 1
      %p104 = scmp.eq.s32.totalorder %s19, 3
      %p105 = scmp.ne.s32.totalorder %s100, %s102
      %p106 = scmp.eq.s32.totalorder %s19, 0
      %p107 = por %p105, %p106
      %p108 = scmp.ne.s32.totalorder %s100, %s102
      %p109 = scmp.eq.s32.totalorder %s24, 3
      %p110 = por %p108, %p109
      %p111 = scmp.ne.s32.totalorder %s102, %s103
      %p112 = scmp.eq.s32.totalorder %s24, 0
      %p113 = por %p111, %p112
      %p114 = scmp.ne.s32.totalorder %s102, %s103
      %p115 = scmp.eq.s32.totalorder %s25, 3
      %p116 = por %p114, %p115
      %p118 = scmp.ne.s32.totalorder %s103, %s117
      %p119 = scmp.eq.s32.totalorder %s25, 0
      %p120 = por %p118, %p119
      %s122 = sadd.s32 %s121, 1
      %p125 = scmp.eq.s32.totalorder %s19, 3
      %p126 = scmp.ne.s32.totalorder %s121, %s123
      %p127 = scmp.eq.s32.totalorder %s19, 0
      %p128 = por %p126, %p127
      %p129 = scmp.ne.s32.totalorder %s121, %s123
      %p130 = scmp.eq.s32.totalorder %s24, 3
      %p131 = por %p129, %p130
      %p132 = scmp.ne.s32.totalorder %s123, %s124
      %p133 = scmp.eq.s32.totalorder %s24, 0
      %p134 = por %p132, %p133
      %p135 = scmp.ne.s32.totalorder %s123, %s124
      %p136 = scmp.eq.s32.totalorder %s25, 3
      %p137 = por %p135, %p136
      %p139 = scmp.ne.s32.totalorder %s124, %s138
      %p140 = scmp.eq.s32.totalorder %s25, 0
      %p141 = por %p139, %p140
      %s143 = sadd.s32 %s142, 1
      %p146 = scmp.eq.s32.totalorder %s19, 3
      %p147 = scmp.ne.s32.totalorder %s142, %s144
      %p148 = scmp.eq.s32.totalorder %s19, 0
      %p149 = por %p147, %p148
      %p150 = scmp.ne.s32.totalorder %s142, %s144
      %p151 = scmp.eq.s32.totalorder %s24, 3
      %p152 = por %p150, %p151
      %p153 = scmp.ne.s32.totalorder %s144, %s145
      %p154 = scmp.eq.s32.totalorder %s24, 0
      %p155 = por %p153, %p154
      %p156 = scmp.ne.s32.totalorder %s144, %s145
      %p157 = scmp.eq.s32.totalorder %s25, 3
      %p158 = por %p156, %p157
      %p160 = scmp.ne.s32.totalorder %s145, %s159
      %p161 = scmp.eq.s32.totalorder %s25, 0
      %p162 = por %p160, %p161
      %s163 = ssub.s32 %s19, %s26
      %p164 = scmp.eq.s32.totalorder %s163, 0
      %s166 = sadd.s32 %s165, 1
      %s167 = scalar_select %p164, %s165, %s166
      %p170 = pneg %p164
      %p171 = scmp.eq.s32.totalorder %s19, 3
      %p172 = por %p170, %p171
      %p173 = scmp.ne.s32.totalorder %s165, %s168
      %p174 = scmp.eq.s32.totalorder %s19, 0
      %p175 = por %p173, %p174
      %p176 = scmp.ne.s32.totalorder %s165, %s168
      %p177 = scmp.eq.s32.totalorder %s24, 3
      %p178 = por %p176, %p177
      %p179 = scmp.ne.s32.totalorder %s168, %s169
      %p180 = scmp.eq.s32.totalorder %s24, 0
      %p181 = por %p179, %p180
      %p182 = scmp.ne.s32.totalorder %s168, %s169
      %p183 = scmp.eq.s32.totalorder %s25, 3
      %p184 = por %p182, %p183
      %p186 = scmp.ne.s32.totalorder %s169, %s185
      %p187 = scmp.eq.s32.totalorder %s25, 0
      %p188 = por %p186, %p187
      %p189 = scmp.le.s32.totalorder 1, %s19
      %p190 = scmp.lt.s32.totalorder %s19, 5
      %p191 = pnand %p189, %p190
      %p192 = pneg %p191
      // Predicated region
      $region9: #{tpu_custom_call.1} parent=5 // pred_check
        _
      $region10: #{tpu_custom_call.1} parent=5 // pred_check_branch
        %194 = sbr.rel (%p191) target = $region12
      $region11: #{tpu_custom_call.1} parent=5 // pred_region
        %s195 = ssub.s32 %s19, 1
        // Predicated region
        $region13: #{tpu_custom_call.1} parent=11 // pred_check
          %p196 = pneg %p92
        $region14: #{tpu_custom_call.1} parent=11 // pred_check_branch
          %198 = sbr.rel (%p196) target = $region16
        $region15: #{tpu_custom_call.1} parent=11 // pred_region
          %s200 = ssub.s32 8192, 8192
          %201 = vsyncadd [#allocation6], %s200
          %s202 = sshll.u32 [#allocation7], 4
          %s203 = int_to_ptr.vmem [resolvable:$true] %s202
          %208 = dma.hbm_to_vmem [thread:$0]  %s2, 8192, %s203, [#allocation6], 128, 128, 8
        $region16: #{tpu_custom_call.1} parent=11 // pred_fallthru
          _
        // Predicated region
        $region17: #{tpu_custom_call.1} parent=11 // pred_check
          %p209 = pneg %p113
        $region18: #{tpu_custom_call.1} parent=11 // pred_check_branch
          %211 = sbr.rel (%p209) target = $region20
        $region19: #{tpu_custom_call.1} parent=11 // pred_region
          _
        $region20: #{tpu_custom_call.1} parent=11 // pred_fallthru
          _
        // Predicated region
        $region21: #{tpu_custom_call.1} parent=11 // pred_check
          %p212 = pneg %p134
        $region22: #{tpu_custom_call.1} parent=11 // pred_check_branch
          %214 = sbr.rel (%p212) target = $region24
        $region23: #{tpu_custom_call.1} parent=11 // pred_region
          _
        $region24: #{tpu_custom_call.1} parent=11 // pred_fallthru
          _
        // Predicated region
        $region25: #{tpu_custom_call.1} parent=11 // pred_check
          %p215 = pneg %p155
        $region26: #{tpu_custom_call.1} parent=11 // pred_check_branch
          %217 = sbr.rel (%p215) target = $region28
        $region27: #{tpu_custom_call.1} parent=11 // pred_region
          _
        $region28: #{tpu_custom_call.1} parent=11 // pred_fallthru
          _
      $region12: #{tpu_custom_call.1} parent=5 // pred_fallthru
        _
      %p218 = scmp.lt.s32.totalorder %s19, 4
      // Predicated region
      $region29: #{tpu_custom_call.1} parent=5 // pred_check
        %p219 = pneg %p218
      $region30: #{tpu_custom_call.1} parent=5 // pred_check_branch
        %221 = sbr.rel (%p219) target = $region32
      $region31: #{tpu_custom_call.1} parent=5 // pred_region
        // Predicated region
        $region33: #{tpu_custom_call.1} parent=31 // pred_check
          %p222 = pneg %p39
        $region34: #{tpu_custom_call.1} parent=31 // pred_check_branch
          %224 = sbr.rel (%p222) target = $region36
        $region35: #{tpu_custom_call.1} parent=31 // pred_region
          %s225 = sand.u32 %s29, 1
          %s226 = scalar_lea.sflag [#allocation4], %s225
          %s227 = sand.u32 %s29, 1
          %s228 = smul.addr %s227, 256
          %s229 = scalar_lea.vmem [#allocation3], %s228
          %s230 = smul.u32 16, %s19
          %s232 = ssub.s32 4096, 4096
          %233 = vsyncadd %s226, %s232
          %s234 = smul.addr %s230, 2
          %s235 = smul.addr %s234, 128
          %s236 = scalar_lea.hbm %s0, %s235
          %s237 = sshll.u32 %s229, 4
          %s238 = int_to_ptr.vmem [resolvable:$true] %s237
          %243 = dma.hbm_to_vmem [thread:$0]  %s236, 4096, %s238, %s226, 256, 256, 16
        $region36: #{tpu_custom_call.1} parent=31 // pred_fallthru
          _
        // Predicated region
        $region37: #{tpu_custom_call.1} parent=31 // pred_check
          %p244 = pneg %p65
        $region38: #{tpu_custom_call.1} parent=31 // pred_check_branch
          %246 = sbr.rel (%p244) target = $region40
        $region39: #{tpu_custom_call.1} parent=31 // pred_region
          %s247 = sand.u32 %s19, 1
          %s248 = scalar_lea.sflag [#allocation6], %s247
          %s249 = sand.u32 %s55, 1
          %s250 = smul.addr %s249, 256
          %s251 = scalar_lea.vmem [#allocation5], %s250
          %s252 = smul.u32 16, %s19
          %s254 = ssub.s32 4096, 4096
          %255 = vsyncadd %s248, %s254
          %s256 = smul.addr %s252, 2
          %s257 = smul.addr %s256, 128
          %s258 = scalar_lea.hbm %s1, %s257
          %s259 = sshll.u32 %s251, 4
          %s260 = int_to_ptr.vmem [resolvable:$true] %s259
          %265 = dma.hbm_to_vmem [thread:$0]  %s258, 4096, %s260, %s248, 256, 256, 16
        $region40: #{tpu_custom_call.1} parent=31 // pred_fallthru
          _
      $region32: #{tpu_custom_call.1} parent=5 // pred_fallthru
        _
      %p266 = scmp.le.s32.totalorder 1, %s19
      %p267 = scmp.lt.s32.totalorder %s19, 5
      %p268 = pnand %p266, %p267
      %p269 = pneg %p268
      // Predicated region
      $region41: #{tpu_custom_call.1} parent=5 // pred_check
        _
      $region42: #{tpu_custom_call.1} parent=5 // pred_check_branch
        %271 = sbr.rel (%p268) target = $region44
      $region43: #{tpu_custom_call.1} parent=5 // pred_region
        %s272 = ssub.s32 %s19, 1
        %s273 = sand.u32 %s32, 1
        %s274 = scalar_lea.sflag [#allocation4], %s273
        %s275 = sand.u32 %s32, 1
        %s276 = smul.addr %s275, 256
        %s277 = scalar_lea.vmem [#allocation3], %s276
        // Predicated region
        $region45: #{tpu_custom_call.1} parent=43 // pred_check
          %p278 = pneg %p45
        $region46: #{tpu_custom_call.1} parent=43 // pred_check_branch
          %280 = sbr.rel (%p278) target = $region48
        $region47: #{tpu_custom_call.1} parent=43 // pred_region
          %281 = dma.done %s274, 4096
        $region48: #{tpu_custom_call.1} parent=43 // pred_fallthru
          _
        %s282 = sand.u32 %s24, 1
        %s283 = scalar_lea.sflag [#allocation6], %s282
        %s284 = sand.u32 %s58, 1
        %s285 = smul.addr %s284, 256
        %s286 = scalar_lea.vmem [#allocation5], %s285
        // Predicated region
        $region49: #{tpu_custom_call.1} parent=43 // pred_check
          %p287 = pneg %p71
        $region50: #{tpu_custom_call.1} parent=43 // pred_check_branch
          %289 = sbr.rel (%p287) target = $region52
        $region51: #{tpu_custom_call.1} parent=43 // pred_region
          %290 = dma.done %s283, 4096
        $region52: #{tpu_custom_call.1} parent=43 // pred_fallthru
          _
        // Predicated region
        $region53: #{tpu_custom_call.1} parent=43 // pred_check
          %p291 = pneg %p92
        $region54: #{tpu_custom_call.1} parent=43 // pred_check_branch
          %293 = sbr.rel (%p291) target = $region56
        $region55: #{tpu_custom_call.1} parent=43 // pred_region
          %294 = dma.done [#allocation6], 8192
        $region56: #{tpu_custom_call.1} parent=43 // pred_fallthru
          _
        %s295 = sand.u32 %s32, 1
        %s296 = scalar_lea.sflag [#allocation4], %s295
        %s297 = sand.u32 %s32, 1
        %s298 = smul.addr %s297, 256
        %s299 = scalar_lea.vmem [#allocation3], %s298
        %p300 = pneg %p45
        %p301 = pneg %p42
        %s302 = sand.u32 %s24, 1
        %s303 = scalar_lea.sflag [#allocation6], %s302
        %s304 = sand.u32 %s58, 1
        %s305 = smul.addr %s304, 256
        %s306 = scalar_lea.vmem [#allocation5], %s305
        %p307 = pneg %p71
        %p308 = pneg %p68
        %p309 = pneg %p92
        %p310 = pneg %p89
        %p311 = pneg %p113
        %p312 = pneg %p110
        %p313 = pneg %p134
        %p314 = pneg %p131
        %p315 = pneg %p155
        %p316 = pneg %p152
        %p317 = pneg %p181
        %p318 = pneg %p178
        %s319 = smul.u32 16, %s24
        %p320 = scmp.lt.s32.totalorder %s319, 63
        %s321 = scalar_select %p320, %s319, 63
        %s322 = smul.addr %s321, 8
        %s323 = scalar_lea.vmem %s6, %s322
        %s324 = smul.u32 16, %s24
        %s325 = smul.u32 16, %s24
        %s326 = smul.u32 16, %s24
        %p327 = scmp.lt.s32.totalorder %s326, 63
        %s328 = scalar_select %p327, %s326, 63
        %s329 = smul.addr %s328, 8
        %s330 = scalar_lea.vmem %s6, %s329
        %s331 = smul.u32 16, %s24
        %v332 = vld [vmem:[%s277] sm:$0xff]
        %v333 = vld [vmem:[%s277 + $0x8] sm:$0xff]
        %v334 = vld [vmem:[%s277 + $0x10] sm:$0xff]
        %v335 = vld [vmem:[%s277 + $0x18] sm:$0xff]
        %v336 = vld [vmem:[%s277 + $0x20] sm:$0xff]
        %v337 = vld [vmem:[%s277 + $0x28] sm:$0xff]
        %v338 = vld [vmem:[%s277 + $0x30] sm:$0xff]
        %v339 = vld [vmem:[%s277 + $0x38] sm:$0xff]
        %v340 = vld [vmem:[%s277 + $0x40] sm:$0xff]
        %v341 = vld [vmem:[%s277 + $0x48] sm:$0xff]
        %v342 = vld [vmem:[%s277 + $0x50] sm:$0xff]
        %v343 = vld [vmem:[%s277 + $0x58] sm:$0xff]
        %v344 = vld [vmem:[%s277 + $0x60] sm:$0xff]
        %v345 = vld [vmem:[%s277 + $0x68] sm:$0xff]
        %v346 = vld [vmem:[%s277 + $0x70] sm:$0xff]
        %v347 = vld [vmem:[%s277 + $0x78] sm:$0xff]
        %v348 = vld [vmem:[%s277 + $0x80] sm:$0xff]
        %v349 = vld [vmem:[%s277 + $0x88] sm:$0xff]
        %v350 = vld [vmem:[%s277 + $0x90] sm:$0xff]
        %v351 = vld [vmem:[%s277 + $0x98] sm:$0xff]
        %v352 = vld [vmem:[%s277 + $0xa0] sm:$0xff]
        %v353 = vld [vmem:[%s277 + $0xa8] sm:$0xff]
        %v354 = vld [vmem:[%s277 + $0xb0] sm:$0xff]
        %v355 = vld [vmem:[%s277 + $0xb8] sm:$0xff]
        %v356 = vld [vmem:[%s277 + $0xc0] sm:$0xff]
        %v357 = vld [vmem:[%s277 + $0xc8] sm:$0xff]
        %v358 = vld [vmem:[%s277 + $0xd0] sm:$0xff]
        %v359 = vld [vmem:[%s277 + $0xd8] sm:$0xff]
        %v360 = vld [vmem:[%s277 + $0xe0] sm:$0xff]
        %v361 = vld [vmem:[%s277 + $0xe8] sm:$0xff]
        %v362 = vld [vmem:[%s277 + $0xf0] sm:$0xff]
        %v363 = vld [vmem:[%s277 + $0xf8] sm:$0xff]
        %v364 = vpack.c.bf16 %v334, %v332
        %v365 = vpack.c.bf16 %v335, %v333
        %v366 = vpack.c.bf16 %v338, %v336
        %v367 = vpack.c.bf16 %v339, %v337
        %v368 = vpack.c.bf16 %v342, %v340
        %v369 = vpack.c.bf16 %v343, %v341
        %v370 = vpack.c.bf16 %v346, %v344
        %v371 = vpack.c.bf16 %v347, %v345
        %v372 = vpack.c.bf16 %v350, %v348
        %v373 = vpack.c.bf16 %v351, %v349
        %v374 = vpack.c.bf16 %v354, %v352
        %v375 = vpack.c.bf16 %v355, %v353
        %v376 = vpack.c.bf16 %v358, %v356
        %v377 = vpack.c.bf16 %v359, %v357
        %v378 = vpack.c.bf16 %v362, %v360
        %v379 = vpack.c.bf16 %v363, %v361
        %v380 = vld [vmem:[%s286] sm:$0xff]
        %v381 = vld [vmem:[%s286 + $0x8] sm:$0xff]
        %v382 = vld [vmem:[%s286 + $0x10] sm:$0xff]
        %v383 = vld [vmem:[%s286 + $0x18] sm:$0xff]
        %v384 = vld [vmem:[%s286 + $0x20] sm:$0xff]
        %v385 = vld [vmem:[%s286 + $0x28] sm:$0xff]
        %v386 = vld [vmem:[%s286 + $0x30] sm:$0xff]
        %v387 = vld [vmem:[%s286 + $0x38] sm:$0xff]
        %v388 = vld [vmem:[%s286 + $0x40] sm:$0xff]
        %v389 = vld [vmem:[%s286 + $0x48] sm:$0xff]
        %v390 = vld [vmem:[%s286 + $0x50] sm:$0xff]
        %v391 = vld [vmem:[%s286 + $0x58] sm:$0xff]
        %v392 = vld [vmem:[%s286 + $0x60] sm:$0xff]
        %v393 = vld [vmem:[%s286 + $0x68] sm:$0xff]
        %v394 = vld [vmem:[%s286 + $0x70] sm:$0xff]
        %v395 = vld [vmem:[%s286 + $0x78] sm:$0xff]
        %v396 = vld [vmem:[%s286 + $0x80] sm:$0xff]
        %v397 = vld [vmem:[%s286 + $0x88] sm:$0xff]
        %v398 = vld [vmem:[%s286 + $0x90] sm:$0xff]
        %v399 = vld [vmem:[%s286 + $0x98] sm:$0xff]
        %v400 = vld [vmem:[%s286 + $0xa0] sm:$0xff]
        %v401 = vld [vmem:[%s286 + $0xa8] sm:$0xff]
        %v402 = vld [vmem:[%s286 + $0xb0] sm:$0xff]
        %v403 = vld [vmem:[%s286 + $0xb8] sm:$0xff]
        %v404 = vld [vmem:[%s286 + $0xc0] sm:$0xff]
        %v405 = vld [vmem:[%s286 + $0xc8] sm:$0xff]
        %v406 = vld [vmem:[%s286 + $0xd0] sm:$0xff]
        %v407 = vld [vmem:[%s286 + $0xd8] sm:$0xff]
        %v408 = vld [vmem:[%s286 + $0xe0] sm:$0xff]
        %v409 = vld [vmem:[%s286 + $0xe8] sm:$0xff]
        %v410 = vld [vmem:[%s286 + $0xf0] sm:$0xff]
        %v411 = vld [vmem:[%s286 + $0xf8] sm:$0xff]
        %v412 = vpack.c.bf16 %v382, %v380
        %v413 = vpack.c.bf16 %v383, %v381
        %v414 = vpack.c.bf16 %v386, %v384
        %v415 = vpack.c.bf16 %v387, %v385
        %v416 = vpack.c.bf16 %v390, %v388
        %v417 = vpack.c.bf16 %v391, %v389
        %v418 = vpack.c.bf16 %v394, %v392
        %v419 = vpack.c.bf16 %v395, %v393
        %v420 = vpack.c.bf16 %v398, %v396
        %v421 = vpack.c.bf16 %v399, %v397
        %v422 = vpack.c.bf16 %v402, %v400
        %v423 = vpack.c.bf16 %v403, %v401
        %v424 = vpack.c.bf16 %v406, %v404
        %v425 = vpack.c.bf16 %v407, %v405
        %v426 = vpack.c.bf16 %v410, %v408
        %v427 = vpack.c.bf16 %v411, %v409
        %v428 = vld [vmem:[#allocation7] sm:$0xff]
        %v429 = vld [vmem:[#allocation7 + $0x8] sm:$0xff]
        %v430 = vld [vmem:[#allocation7 + $0x10] sm:$0xff]
        %v431 = vld [vmem:[#allocation7 + $0x18] sm:$0xff]
        %v432 = vld [vmem:[#allocation7 + $0x20] sm:$0xff]
        %v433 = vld [vmem:[#allocation7 + $0x28] sm:$0xff]
        %v434 = vld [vmem:[#allocation7 + $0x30] sm:$0xff]
        %v435 = vld [vmem:[#allocation7 + $0x38] sm:$0xff]
        %v436 = vld [vmem:[#allocation7 + $0x40] sm:$0xff]
        %v437 = vld [vmem:[#allocation7 + $0x48] sm:$0xff]
        %v438 = vld [vmem:[#allocation7 + $0x50] sm:$0xff]
        %v439 = vld [vmem:[#allocation7 + $0x58] sm:$0xff]
        %v440 = vld [vmem:[#allocation7 + $0x60] sm:$0xff]
        %v441 = vld [vmem:[#allocation7 + $0x68] sm:$0xff]
        %v442 = vld [vmem:[#allocation7 + $0x70] sm:$0xff]
        %v443 = vld [vmem:[#allocation7 + $0x78] sm:$0xff]
        %v444 = vld [vmem:[#allocation7 + $0x80] sm:$0xff]
        %v445 = vld [vmem:[#allocation7 + $0x88] sm:$0xff]
        %v446 = vld [vmem:[#allocation7 + $0x90] sm:$0xff]
        %v447 = vld [vmem:[#allocation7 + $0x98] sm:$0xff]
        %v448 = vld [vmem:[#allocation7 + $0xa0] sm:$0xff]
        %v449 = vld [vmem:[#allocation7 + $0xa8] sm:$0xff]
        %v450 = vld [vmem:[#allocation7 + $0xb0] sm:$0xff]
        %v451 = vld [vmem:[#allocation7 + $0xb8] sm:$0xff]
        %v452 = vld [vmem:[#allocation7 + $0xc0] sm:$0xff]
        %v453 = vld [vmem:[#allocation7 + $0xc8] sm:$0xff]
        %v454 = vld [vmem:[#allocation7 + $0xd0] sm:$0xff]
        %v455 = vld [vmem:[#allocation7 + $0xd8] sm:$0xff]
        %v456 = vld [vmem:[#allocation7 + $0xe0] sm:$0xff]
        %v457 = vld [vmem:[#allocation7 + $0xe8] sm:$0xff]
        %v458 = vld [vmem:[#allocation7 + $0xf0] sm:$0xff]
        %v459 = vld [vmem:[#allocation7 + $0xf8] sm:$0xff]
        %s460 = scalar_lea.vmem [#allocation7], 256
        %v461 = vld [vmem:[%s460] sm:$0xff]
        %v462 = vld [vmem:[%s460 + $0x8] sm:$0xff]
        %v463 = vld [vmem:[%s460 + $0x10] sm:$0xff]
        %v464 = vld [vmem:[%s460 + $0x18] sm:$0xff]
        %v465 = vld [vmem:[%s460 + $0x20] sm:$0xff]
        %v466 = vld [vmem:[%s460 + $0x28] sm:$0xff]
        %v467 = vld [vmem:[%s460 + $0x30] sm:$0xff]
        %v468 = vld [vmem:[%s460 + $0x38] sm:$0xff]
        %v469 = vld [vmem:[%s460 + $0x40] sm:$0xff]
        %v470 = vld [vmem:[%s460 + $0x48] sm:$0xff]
        %v471 = vld [vmem:[%s460 + $0x50] sm:$0xff]
        %v472 = vld [vmem:[%s460 + $0x58] sm:$0xff]
        %v473 = vld [vmem:[%s460 + $0x60] sm:$0xff]
        %v474 = vld [vmem:[%s460 + $0x68] sm:$0xff]
        %v475 = vld [vmem:[%s460 + $0x70] sm:$0xff]
        %v476 = vld [vmem:[%s460 + $0x78] sm:$0xff]
        %v477 = vld [vmem:[%s460 + $0x80] sm:$0xff]
        %v478 = vld [vmem:[%s460 + $0x88] sm:$0xff]
        %v479 = vld [vmem:[%s460 + $0x90] sm:$0xff]
        %v480 = vld [vmem:[%s460 + $0x98] sm:$0xff]
        %v481 = vld [vmem:[%s460 + $0xa0] sm:$0xff]
        %v482 = vld [vmem:[%s460 + $0xa8] sm:$0xff]
        %v483 = vld [vmem:[%s460 + $0xb0] sm:$0xff]
        %v484 = vld [vmem:[%s460 + $0xb8] sm:$0xff]
        %v485 = vld [vmem:[%s460 + $0xc0] sm:$0xff]
        %v486 = vld [vmem:[%s460 + $0xc8] sm:$0xff]
        %v487 = vld [vmem:[%s460 + $0xd0] sm:$0xff]
        %v488 = vld [vmem:[%s460 + $0xd8] sm:$0xff]
        %v489 = vld [vmem:[%s460 + $0xe0] sm:$0xff]
        %v490 = vld [vmem:[%s460 + $0xe8] sm:$0xff]
        %v491 = vld [vmem:[%s460 + $0xf0] sm:$0xff]
        %v492 = vld [vmem:[%s460 + $0xf8] sm:$0xff]
        %v525 = vunpack.c.l.b16 %v461
        %v526 = vunpack.c.h.b16 %v461
        %v527 = vunpack.c.l.b16 %v462
        %v528 = vunpack.c.h.b16 %v462
        %v529 = vunpack.c.l.b16 %v463
        %v530 = vunpack.c.h.b16 %v463
        %v531 = vunpack.c.l.b16 %v464
        %v532 = vunpack.c.h.b16 %v464
        %v533 = vunpack.c.l.b16 %v465
        %v534 = vunpack.c.h.b16 %v465
        %v535 = vunpack.c.l.b16 %v466
        %v536 = vunpack.c.h.b16 %v466
        %v537 = vunpack.c.l.b16 %v467
        %v538 = vunpack.c.h.b16 %v467
        %v539 = vunpack.c.l.b16 %v468
        %v540 = vunpack.c.h.b16 %v468
        %v541 = vunpack.c.l.b16 %v469
        %v542 = vunpack.c.h.b16 %v469
        %v543 = vunpack.c.l.b16 %v470
        %v544 = vunpack.c.h.b16 %v470
        %v545 = vunpack.c.l.b16 %v471
        %v546 = vunpack.c.h.b16 %v471
        %v547 = vunpack.c.l.b16 %v472
        %v548 = vunpack.c.h.b16 %v472
        %v549 = vunpack.c.l.b16 %v473
        %v550 = vunpack.c.h.b16 %v473
        %v551 = vunpack.c.l.b16 %v474
        %v552 = vunpack.c.h.b16 %v474
        %v553 = vunpack.c.l.b16 %v475
        %v554 = vunpack.c.h.b16 %v475
        %v555 = vunpack.c.l.b16 %v476
        %v556 = vunpack.c.h.b16 %v476
        %v557 = vunpack.c.l.b16 %v477
        %v558 = vunpack.c.h.b16 %v477
        %v559 = vunpack.c.l.b16 %v478
        %v560 = vunpack.c.h.b16 %v478
        %v561 = vunpack.c.l.b16 %v479
        %v562 = vunpack.c.h.b16 %v479
        %v563 = vunpack.c.l.b16 %v480
        %v564 = vunpack.c.h.b16 %v480
        %v565 = vunpack.c.l.b16 %v481
        %v566 = vunpack.c.h.b16 %v481
        %v567 = vunpack.c.l.b16 %v482
        %v568 = vunpack.c.h.b16 %v482
        %v569 = vunpack.c.l.b16 %v483
        %v570 = vunpack.c.h.b16 %v483
        %v571 = vunpack.c.l.b16 %v484
        %v572 = vunpack.c.h.b16 %v484
        %v573 = vunpack.c.l.b16 %v485
        %v574 = vunpack.c.h.b16 %v485
        %v575 = vunpack.c.l.b16 %v486
        %v576 = vunpack.c.h.b16 %v486
        %v577 = vunpack.c.l.b16 %v487
        %v578 = vunpack.c.h.b16 %v487
        %v579 = vunpack.c.l.b16 %v488
        %v580 = vunpack.c.h.b16 %v488
        %v581 = vunpack.c.l.b16 %v489
        %v582 = vunpack.c.h.b16 %v489
        %v583 = vunpack.c.l.b16 %v490
        %v584 = vunpack.c.h.b16 %v490
        %v585 = vunpack.c.l.b16 %v491
        %v586 = vunpack.c.h.b16 %v491
        %v587 = vunpack.c.l.b16 %v492
        %v588 = vunpack.c.h.b16 %v492
        %v589 = vpack.c.b16 %v527, %v525
        %v590 = vpack.c.b16 %v528, %v526
        %v591 = vpack.c.b16 %v531, %v529
        %v592 = vpack.c.b16 %v532, %v530
        %v593 = vpack.c.b16 %v535, %v533
        %v594 = vpack.c.b16 %v536, %v534
        %v595 = vpack.c.b16 %v539, %v537
        %v596 = vpack.c.b16 %v540, %v538
        %v597 = vpack.c.b16 %v543, %v541
        %v598 = vpack.c.b16 %v544, %v542
        %v599 = vpack.c.b16 %v547, %v545
        %v600 = vpack.c.b16 %v548, %v546
        %v601 = vpack.c.b16 %v551, %v549
        %v602 = vpack.c.b16 %v552, %v550
        %v603 = vpack.c.b16 %v555, %v553
        %v604 = vpack.c.b16 %v556, %v554
        %v605 = vpack.c.b16 %v559, %v557
        %v606 = vpack.c.b16 %v560, %v558
        %v607 = vpack.c.b16 %v563, %v561
        %v608 = vpack.c.b16 %v564, %v562
        %v609 = vpack.c.b16 %v567, %v565
        %v610 = vpack.c.b16 %v568, %v566
        %v611 = vpack.c.b16 %v571, %v569
        %v612 = vpack.c.b16 %v572, %v570
        %v613 = vpack.c.b16 %v575, %v573
        %v614 = vpack.c.b16 %v576, %v574
        %v615 = vpack.c.b16 %v579, %v577
        %v616 = vpack.c.b16 %v580, %v578
        %v617 = vpack.c.b16 %v583, %v581
        %v618 = vpack.c.b16 %v584, %v582
        %v619 = vpack.c.b16 %v587, %v585
        %v620 = vpack.c.b16 %v588, %v586
        %653 = vmatprep.subr.bf16.mxu0 %v590
        %654 = vmatpush1.bf16.msra.mxu0 %v589
        %655 = vmatprep.subr.bf16.mxu0 %v592
        %656 = vmatpush1.bf16.msra.mxu0 %v591
        %657 = vmatprep.subr.bf16.mxu0 %v594
        %658 = vmatpush1.bf16.msra.mxu0 %v593
        %659 = vmatprep.subr.bf16.mxu0 %v596
        %660 = vmatpush1.bf16.msra.mxu0 %v595
        %661 = vmatprep.subr.bf16.mxu0 %v598
        %662 = vmatpush1.bf16.msra.mxu0 %v597
        %663 = vmatprep.subr.bf16.mxu0 %v600
        %664 = vmatpush1.bf16.msra.mxu0 %v599
        %665 = vmatprep.subr.bf16.mxu0 %v602
        %666 = vmatpush1.bf16.msra.mxu0 %v601
        %667 = vmatprep.subr.bf16.mxu0 %v604
        %668 = vmatpush1.bf16.msra.mxu0 %v603
        %669 = vmatprep.subr.bf16.mxu0 %v606
        %670 = vmatpush1.bf16.msra.mxu0 %v605
        %671 = vmatprep.subr.bf16.mxu0 %v608
        %672 = vmatpush1.bf16.msra.mxu0 %v607
        %673 = vmatprep.subr.bf16.mxu0 %v610
        %674 = vmatpush1.bf16.msra.mxu0 %v609
        %675 = vmatprep.subr.bf16.mxu0 %v612
        %676 = vmatpush1.bf16.msra.mxu0 %v611
        %677 = vmatprep.subr.bf16.mxu0 %v614
        %678 = vmatpush1.bf16.msra.mxu0 %v613
        %679 = vmatprep.subr.bf16.mxu0 %v616
        %680 = vmatpush1.bf16.msra.mxu0 %v615
        %681 = vmatprep.subr.bf16.mxu0 %v618
        %682 = vmatpush1.bf16.msra.mxu0 %v617
        %683 = vmatprep.subr.bf16.mxu0 %v620
        %684 = vmatpush1.bf16.msra.mxu0 %v619
        %685 = vmatprep.mubr.bf16.mxu0 %v413
        %686 = vmatmul.mubr.bf16.gmra.mrb[0].mxu0 %v412
        %v687 = vpop.f32.mrb[0].mxu0
        %v688 = vadd.f32 0.0, %v687
        %v689 = vpop.f32.mrb[0].mxu0
        %v690 = vadd.f32 0.0, %v689
        %v691 = vpop.f32.mrb[0].mxu0
        %v692 = vadd.f32 0.0, %v691
        %v693 = vpop.f32.mrb[0].mxu0
        %v694 = vadd.f32 0.0, %v693
        %695 = vmatprep.mubr.bf16.mxu0 %v415
        %696 = vmatmul.mubr.bf16.gmra.mrb[0].mxu0 %v414
        %v697 = vpop.f32.mrb[0].mxu0
        %v698 = vadd.f32 0.0, %v697
        %v699 = vpop.f32.mrb[0].mxu0
        %v700 = vadd.f32 0.0, %v699
        %v701 = vpop.f32.mrb[0].mxu0
        %v702 = vadd.f32 0.0, %v701
        %v703 = vpop.f32.mrb[0].mxu0
        %v704 = vadd.f32 0.0, %v703
        %705 = vmatprep.mubr.bf16.mxu0 %v417
        %706 = vmatmul.mubr.bf16.gmra.mrb[0].mxu0 %v416
        %v707 = vpop.f32.mrb[0].mxu0
        %v708 = vadd.f32 0.0, %v707
        %v709 = vpop.f32.mrb[0].mxu0
        %v710 = vadd.f32 0.0, %v709
        %v711 = vpop.f32.mrb[0].mxu0
        %v712 = vadd.f32 0.0, %v711
        %v713 = vpop.f32.mrb[0].mxu0
        %v714 = vadd.f32 0.0, %v713
        %715 = vmatprep.mubr.bf16.mxu0 %v419
        %716 = vmatmul.mubr.bf16.gmra.mrb[0].mxu0 %v418
        %v717 = vpop.f32.mrb[0].mxu0
        %v718 = vadd.f32 0.0, %v717
        %v719 = vpop.f32.mrb[0].mxu0
        %v720 = vadd.f32 0.0, %v719
        %v721 = vpop.f32.mrb[0].mxu0
        %v722 = vadd.f32 0.0, %v721
        %v723 = vpop.f32.mrb[0].mxu0
        %v724 = vadd.f32 0.0, %v723
        %725 = vmatprep.mubr.bf16.mxu0 %v421
        %726 = vmatmul.mubr.bf16.gmra.mrb[0].mxu0 %v420
        %v727 = vpop.f32.mrb[0].mxu0
        %v728 = vadd.f32 0.0, %v727
        %v729 = vpop.f32.mrb[0].mxu0
        %v730 = vadd.f32 0.0, %v729
        %v731 = vpop.f32.mrb[0].mxu0
        %v732 = vadd.f32 0.0, %v731
        %v733 = vpop.f32.mrb[0].mxu0
        %v734 = vadd.f32 0.0, %v733
        %735 = vmatprep.mubr.bf16.mxu0 %v423
        %736 = vmatmul.mubr.bf16.gmra.mrb[0].mxu0 %v422
        %v737 = vpop.f32.mrb[0].mxu0
        %v738 = vadd.f32 0.0, %v737
        %v739 = vpop.f32.mrb[0].mxu0
        %v740 = vadd.f32 0.0, %v739
        %v741 = vpop.f32.mrb[0].mxu0
        %v742 = vadd.f32 0.0, %v741
        %v743 = vpop.f32.mrb[0].mxu0
        %v744 = vadd.f32 0.0, %v743
        %745 = vmatprep.mubr.bf16.mxu0 %v425
        %746 = vmatmul.mubr.bf16.gmra.mrb[0].mxu0 %v424
        %v747 = vpop.f32.mrb[0].mxu0
        %v748 = vadd.f32 0.0, %v747
        %v749 = vpop.f32.mrb[0].mxu0
        %v750 = vadd.f32 0.0, %v749
        %v751 = vpop.f32.mrb[0].mxu0
        %v752 = vadd.f32 0.0, %v751
        %v753 = vpop.f32.mrb[0].mxu0
        %v754 = vadd.f32 0.0, %v753
        %755 = vmatprep.mubr.bf16.mxu0 %v427
        %756 = vmatmul.mubr.bf16.gmra.mrb[0].mxu0 %v426
        %v757 = vpop.f32.mrb[0].mxu0
        %v758 = vadd.f32 0.0, %v757
        %v759 = vpop.f32.mrb[0].mxu0
        %v760 = vadd.f32 0.0, %v759
        %v761 = vpop.f32.mrb[0].mxu0
        %v762 = vadd.f32 0.0, %v761
        %v763 = vpop.f32.mrb[0].mxu0
        %v764 = vadd.f32 0.0, %v763
        %765 = vdwg.mxu0
        %v798 = vunpack.c.l.b16 %v428
        %v799 = vunpack.c.h.b16 %v428
        %v800 = vunpack.c.l.b16 %v429
        %v801 = vunpack.c.h.b16 %v429
        %v802 = vunpack.c.l.b16 %v430
        %v803 = vunpack.c.h.b16 %v430
        %v804 = vunpack.c.l.b16 %v431
        %v805 = vunpack.c.h.b16 %v431
        %v806 = vunpack.c.l.b16 %v432
        %v807 = vunpack.c.h.b16 %v432
        %v808 = vunpack.c.l.b16 %v433
        %v809 = vunpack.c.h.b16 %v433
        %v810 = vunpack.c.l.b16 %v434
        %v811 = vunpack.c.h.b16 %v434
        %v812 = vunpack.c.l.b16 %v435
        %v813 = vunpack.c.h.b16 %v435
        %v814 = vunpack.c.l.b16 %v436
        %v815 = vunpack.c.h.b16 %v436
        %v816 = vunpack.c.l.b16 %v437
        %v817 = vunpack.c.h.b16 %v437
        %v818 = vunpack.c.l.b16 %v438
        %v819 = vunpack.c.h.b16 %v438
        %v820 = vunpack.c.l.b16 %v439
        %v821 = vunpack.c.h.b16 %v439
        %v822 = vunpack.c.l.b16 %v440
        %v823 = vunpack.c.h.b16 %v440
        %v824 = vunpack.c.l.b16 %v441
        %v825 = vunpack.c.h.b16 %v441
        %v826 = vunpack.c.l.b16 %v442
        %v827 = vunpack.c.h.b16 %v442
        %v828 = vunpack.c.l.b16 %v443
        %v829 = vunpack.c.h.b16 %v443
        %v830 = vunpack.c.l.b16 %v444
        %v831 = vunpack.c.h.b16 %v444
        %v832 = vunpack.c.l.b16 %v445
        %v833 = vunpack.c.h.b16 %v445
        %v834 = vunpack.c.l.b16 %v446
        %v835 = vunpack.c.h.b16 %v446
        %v836 = vunpack.c.l.b16 %v447
        %v837 = vunpack.c.h.b16 %v447
        %v838 = vunpack.c.l.b16 %v448
        %v839 = vunpack.c.h.b16 %v448
        %v840 = vunpack.c.l.b16 %v449
        %v841 = vunpack.c.h.b16 %v449
        %v842 = vunpack.c.l.b16 %v450
        %v843 = vunpack.c.h.b16 %v450
        %v844 = vunpack.c.l.b16 %v451
        %v845 = vunpack.c.h.b16 %v451
        %v846 = vunpack.c.l.b16 %v452
        %v847 = vunpack.c.h.b16 %v452
        %v848 = vunpack.c.l.b16 %v453
        %v849 = vunpack.c.h.b16 %v453
        %v850 = vunpack.c.l.b16 %v454
        %v851 = vunpack.c.h.b16 %v454
        %v852 = vunpack.c.l.b16 %v455
        %v853 = vunpack.c.h.b16 %v455
        %v854 = vunpack.c.l.b16 %v456
        %v855 = vunpack.c.h.b16 %v456
        %v856 = vunpack.c.l.b16 %v457
        %v857 = vunpack.c.h.b16 %v457
        %v858 = vunpack.c.l.b16 %v458
        %v859 = vunpack.c.h.b16 %v458
        %v860 = vunpack.c.l.b16 %v459
        %v861 = vunpack.c.h.b16 %v459
        %v862 = vpack.c.b16 %v800, %v798
        %v863 = vpack.c.b16 %v801, %v799
        %v864 = vpack.c.b16 %v804, %v802
        %v865 = vpack.c.b16 %v805, %v803
        %v866 = vpack.c.b16 %v808, %v806
        %v867 = vpack.c.b16 %v809, %v807
        %v868 = vpack.c.b16 %v812, %v810
        %v869 = vpack.c.b16 %v813, %v811
        %v870 = vpack.c.b16 %v816, %v814
        %v871 = vpack.c.b16 %v817, %v815
        %v872 = vpack.c.b16 %v820, %v818
        %v873 = vpack.c.b16 %v821, %v819
        %v874 = vpack.c.b16 %v824, %v822
        %v875 = vpack.c.b16 %v825, %v823
        %v876 = vpack.c.b16 %v828, %v826
        %v877 = vpack.c.b16 %v829, %v827
        %v878 = vpack.c.b16 %v832, %v830
        %v879 = vpack.c.b16 %v833, %v831
        %v880 = vpack.c.b16 %v836, %v834
        %v881 = vpack.c.b16 %v837, %v835
        %v882 = vpack.c.b16 %v840, %v838
        %v883 = vpack.c.b16 %v841, %v839
        %v884 = vpack.c.b16 %v844, %v842
        %v885 = vpack.c.b16 %v845, %v843
        %v886 = vpack.c.b16 %v848, %v846
        %v887 = vpack.c.b16 %v849, %v847
        %v888 = vpack.c.b16 %v852, %v850
        %v889 = vpack.c.b16 %v853, %v851
        %v890 = vpack.c.b16 %v856, %v854
        %v891 = vpack.c.b16 %v857, %v855
        %v892 = vpack.c.b16 %v860, %v858
        %v893 = vpack.c.b16 %v861, %v859
        %926 = vmatprep.subr.bf16.mxu0 %v863
        %927 = vmatpush1.bf16.msra.mxu0 %v862
        %928 = vmatprep.subr.bf16.mxu0 %v865
        %929 = vmatpush1.bf16.msra.mxu0 %v864
        %930 = vmatprep.subr.bf16.mxu0 %v867
        %931 = vmatpush1.bf16.msra.mxu0 %v866
        %932 = vmatprep.subr.bf16.mxu0 %v869
        %933 = vmatpush1.bf16.msra.mxu0 %v868
        %934 = vmatprep.subr.bf16.mxu0 %v871
        %935 = vmatpush1.bf16.msra.mxu0 %v870
        %936 = vmatprep.subr.bf16.mxu0 %v873
        %937 = vmatpush1.bf16.msra.mxu0 %v872
        %938 = vmatprep.subr.bf16.mxu0 %v875
        %939 = vmatpush1.bf16.msra.mxu0 %v874
        %940 = vmatprep.subr.bf16.mxu0 %v877
        %941 = vmatpush1.bf16.msra.mxu0 %v876
        %942 = vmatprep.subr.bf16.mxu0 %v879
        %943 = vmatpush1.bf16.msra.mxu0 %v878
        %944 = vmatprep.subr.bf16.mxu0 %v881
        %945 = vmatpush1.bf16.msra.mxu0 %v880
        %946 = vmatprep.subr.bf16.mxu0 %v883
        %947 = vmatpush1.bf16.msra.mxu0 %v882
        %948 = vmatprep.subr.bf16.mxu0 %v885
        %949 = vmatpush1.bf16.msra.mxu0 %v884
        %950 = vmatprep.subr.bf16.mxu0 %v887
        %951 = vmatpush1.bf16.msra.mxu0 %v886
        %952 = vmatprep.subr.bf16.mxu0 %v889
        %953 = vmatpush1.bf16.msra.mxu0 %v888
        %954 = vmatprep.subr.bf16.mxu0 %v891
        %955 = vmatpush1.bf16.msra.mxu0 %v890
        %956 = vmatprep.subr.bf16.mxu0 %v893
        %957 = vmatpush1.bf16.msra.mxu0 %v892
        %958 = vmatprep.mubr.bf16.mxu0 %v365
        %959 = vmatmul.mubr.bf16.gmra.mrb[0].mxu0 %v364
        %v960 = vpop.f32.mrb[0].mxu0
        %v961 = vadd.f32 %v688, %v960
        %v962 = vpop.f32.mrb[0].mxu0
        %v963 = vadd.f32 %v690, %v962
        %v964 = vpop.f32.mrb[0].mxu0
        %v965 = vadd.f32 %v692, %v964
        %v966 = vpop.f32.mrb[0].mxu0
        %v967 = vadd.f32 %v694, %v966
        %968 = vmatprep.mubr.bf16.mxu0 %v367
        %969 = vmatmul.mubr.bf16.gmra.mrb[0].mxu0 %v366
        %v970 = vpop.f32.mrb[0].mxu0
        %v971 = vadd.f32 %v698, %v970
        %v972 = vpop.f32.mrb[0].mxu0
        %v973 = vadd.f32 %v700, %v972
        %v974 = vpop.f32.mrb[0].mxu0
        %v975 = vadd.f32 %v702, %v974
        %v976 = vpop.f32.mrb[0].mxu0
        %v977 = vadd.f32 %v704, %v976
        %978 = vmatprep.mubr.bf16.mxu0 %v369
        %979 = vmatmul.mubr.bf16.gmra.mrb[0].mxu0 %v368
        %v980 = vpop.f32.mrb[0].mxu0
        %v981 = vadd.f32 %v708, %v980
        %v982 = vpop.f32.mrb[0].mxu0
        %v983 = vadd.f32 %v710, %v982
        %v984 = vpop.f32.mrb[0].mxu0
        %v985 = vadd.f32 %v712, %v984
        %v986 = vpop.f32.mrb[0].mxu0
        %v987 = vadd.f32 %v714, %v986
        %988 = vmatprep.mubr.bf16.mxu0 %v371
        %989 = vmatmul.mubr.bf16.gmra.mrb[0].mxu0 %v370
        %v990 = vpop.f32.mrb[0].mxu0
        %v991 = vadd.f32 %v718, %v990
        %v992 = vpop.f32.mrb[0].mxu0
        %v993 = vadd.f32 %v720, %v992
        %v994 = vpop.f32.mrb[0].mxu0
        %v995 = vadd.f32 %v722, %v994
        %v996 = vpop.f32.mrb[0].mxu0
        %v997 = vadd.f32 %v724, %v996
        %998 = vmatprep.mubr.bf16.mxu0 %v373
        %999 = vmatmul.mubr.bf16.gmra.mrb[0].mxu0 %v372
        %v1000 = vpop.f32.mrb[0].mxu0
        %v1001 = vadd.f32 %v728, %v1000
        %v1002 = vpop.f32.mrb[0].mxu0
        %v1003 = vadd.f32 %v730, %v1002
        %v1004 = vpop.f32.mrb[0].mxu0
        %v1005 = vadd.f32 %v732, %v1004
        %v1006 = vpop.f32.mrb[0].mxu0
        %v1007 = vadd.f32 %v734, %v1006
        %1008 = vmatprep.mubr.bf16.mxu0 %v375
        %1009 = vmatmul.mubr.bf16.gmra.mrb[0].mxu0 %v374
        %v1010 = vpop.f32.mrb[0].mxu0
        %v1011 = vadd.f32 %v738, %v1010
        %v1012 = vpop.f32.mrb[0].mxu0
        %v1013 = vadd.f32 %v740, %v1012
        %v1014 = vpop.f32.mrb[0].mxu0
        %v1015 = vadd.f32 %v742, %v1014
        %v1016 = vpop.f32.mrb[0].mxu0
        %v1017 = vadd.f32 %v744, %v1016
        %1018 = vmatprep.mubr.bf16.mxu0 %v377
        %1019 = vmatmul.mubr.bf16.gmra.mrb[0].mxu0 %v376
        %v1020 = vpop.f32.mrb[0].mxu0
        %v1021 = vadd.f32 %v748, %v1020
        %v1022 = vpop.f32.mrb[0].mxu0
        %v1023 = vadd.f32 %v750, %v1022
        %v1024 = vpop.f32.mrb[0].mxu0
        %v1025 = vadd.f32 %v752, %v1024
        %v1026 = vpop.f32.mrb[0].mxu0
        %v1027 = vadd.f32 %v754, %v1026
        %1028 = vmatprep.mubr.bf16.mxu0 %v379
        %1029 = vmatmul.mubr.bf16.gmra.mrb[0].mxu0 %v378
        %v1030 = vpop.f32.mrb[0].mxu0
        %v1031 = vadd.f32 %v758, %v1030
        %v1032 = vpop.f32.mrb[0].mxu0
        %v1033 = vadd.f32 %v760, %v1032
        %v1034 = vpop.f32.mrb[0].mxu0
        %v1035 = vadd.f32 %v762, %v1034
        %v1036 = vpop.f32.mrb[0].mxu0
        %v1037 = vadd.f32 %v764, %v1036
        %1038 = vdwg.mxu0
        %v1039 = vld [vmem:[%s3] sm:$0x3]
        %v1041 = vlaneseq
        %v1042 = vshrl.u32 %v1041, 7
        %v1043 = vsub.s32 0, %v1042
        %v1044 = vrot.slane %v1039, %v1043
        %v1045 = vlaneseq
        %v1046 = vshrl.u32 %v1045, 7
        %v1047 = vsub.s32 1, %v1046
        %v1048 = vrot.slane %v1039, %v1047
        %v1051 = vadd.f32 %v961, %v1044
        %v1052 = vadd.f32 %v963, %v1048
        %v1053 = vadd.f32 %v965, %v1044
        %v1054 = vadd.f32 %v967, %v1048
        %v1055 = vadd.f32 %v971, %v1044
        %v1056 = vadd.f32 %v973, %v1048
        %v1057 = vadd.f32 %v975, %v1044
        %v1058 = vadd.f32 %v977, %v1048
        %v1059 = vadd.f32 %v981, %v1044
        %v1060 = vadd.f32 %v983, %v1048
        %v1061 = vadd.f32 %v985, %v1044
        %v1062 = vadd.f32 %v987, %v1048
        %v1063 = vadd.f32 %v991, %v1044
        %v1064 = vadd.f32 %v993, %v1048
        %v1065 = vadd.f32 %v995, %v1044
        %v1066 = vadd.f32 %v997, %v1048
        %v1067 = vadd.f32 %v1001, %v1044
        %v1068 = vadd.f32 %v1003, %v1048
        %v1069 = vadd.f32 %v1005, %v1044
        %v1070 = vadd.f32 %v1007, %v1048
        %v1071 = vadd.f32 %v1011, %v1044
        %v1072 = vadd.f32 %v1013, %v1048
        %v1073 = vadd.f32 %v1015, %v1044
        %v1074 = vadd.f32 %v1017, %v1048
        %v1075 = vadd.f32 %v1021, %v1044
        %v1076 = vadd.f32 %v1023, %v1048
        %v1077 = vadd.f32 %v1025, %v1044
        %v1078 = vadd.f32 %v1027, %v1048
        %v1079 = vadd.f32 %v1031, %v1044
        %v1080 = vadd.f32 %v1033, %v1048
        %v1081 = vadd.f32 %v1035, %v1044
        %v1082 = vadd.f32 %v1037, %v1048
        %v1083 = vmax.f32 %v1051, 0.0
        %v1084 = vmax.f32 %v1052, 0.0
        %v1085 = vmax.f32 %v1053, 0.0
        %v1086 = vmax.f32 %v1054, 0.0
        %v1087 = vmax.f32 %v1055, 0.0
        %v1088 = vmax.f32 %v1056, 0.0
        %v1089 = vmax.f32 %v1057, 0.0
        %v1090 = vmax.f32 %v1058, 0.0
        %v1091 = vmax.f32 %v1059, 0.0
        %v1092 = vmax.f32 %v1060, 0.0
        %v1093 = vmax.f32 %v1061, 0.0
        %v1094 = vmax.f32 %v1062, 0.0
        %v1095 = vmax.f32 %v1063, 0.0
        %v1096 = vmax.f32 %v1064, 0.0
        %v1097 = vmax.f32 %v1065, 0.0
        %v1098 = vmax.f32 %v1066, 0.0
        %v1099 = vmax.f32 %v1067, 0.0
        %v1100 = vmax.f32 %v1068, 0.0
        %v1101 = vmax.f32 %v1069, 0.0
        %v1102 = vmax.f32 %v1070, 0.0
        %v1103 = vmax.f32 %v1071, 0.0
        %v1104 = vmax.f32 %v1072, 0.0
        %v1105 = vmax.f32 %v1073, 0.0
        %v1106 = vmax.f32 %v1074, 0.0
        %v1107 = vmax.f32 %v1075, 0.0
        %v1108 = vmax.f32 %v1076, 0.0
        %v1109 = vmax.f32 %v1077, 0.0
        %v1110 = vmax.f32 %v1078, 0.0
        %v1111 = vmax.f32 %v1079, 0.0
        %v1112 = vmax.f32 %v1080, 0.0
        %v1113 = vmax.f32 %v1081, 0.0
        %v1114 = vmax.f32 %v1082, 0.0
        %v1115 = vld [vmem:[%s4] sm:$0x3]
        %v1117 = vlaneseq
        %v1118 = vshrl.u32 %v1117, 7
        %v1119 = vsub.s32 0, %v1118
        %v1120 = vrot.slane %v1115, %v1119
        %v1121 = vlaneseq
        %v1122 = vshrl.u32 %v1121, 7
        %v1123 = vsub.s32 1, %v1122
        %v1124 = vrot.slane %v1115, %v1123
        %v1127 = vmul.f32 %v1083, %v1120
        %v1128 = vmul.f32 %v1084, %v1124
        %v1129 = vmul.f32 %v1085, %v1120
        %v1130 = vmul.f32 %v1086, %v1124
        %v1131 = vmul.f32 %v1087, %v1120
        %v1132 = vmul.f32 %v1088, %v1124
        %v1133 = vmul.f32 %v1089, %v1120
        %v1134 = vmul.f32 %v1090, %v1124
        %v1135 = vmul.f32 %v1091, %v1120
        %v1136 = vmul.f32 %v1092, %v1124
        %v1137 = vmul.f32 %v1093, %v1120
        %v1138 = vmul.f32 %v1094, %v1124
        %v1139 = vmul.f32 %v1095, %v1120
        %v1140 = vmul.f32 %v1096, %v1124
        %v1141 = vmul.f32 %v1097, %v1120
        %v1142 = vmul.f32 %v1098, %v1124
        %v1143 = vmul.f32 %v1099, %v1120
        %v1144 = vmul.f32 %v1100, %v1124
        %v1145 = vmul.f32 %v1101, %v1120
        %v1146 = vmul.f32 %v1102, %v1124
        %v1147 = vmul.f32 %v1103, %v1120
        %v1148 = vmul.f32 %v1104, %v1124
        %v1149 = vmul.f32 %v1105, %v1120
        %v1150 = vmul.f32 %v1106, %v1124
        %v1151 = vmul.f32 %v1107, %v1120
        %v1152 = vmul.f32 %v1108, %v1124
        %v1153 = vmul.f32 %v1109, %v1120
        %v1154 = vmul.f32 %v1110, %v1124
        %v1155 = vmul.f32 %v1111, %v1120
        %v1156 = vmul.f32 %v1112, %v1124
        %v1157 = vmul.f32 %v1113, %v1120
        %v1158 = vmul.f32 %v1114, %v1124
        %v1159 = vadd.f32 %v1127, %v1128
        %1160 = vadd.xlane.f32.xlu0 %v1159
        %v1161 = vpop.xlane.xlu0 %1160
        %v1162 = vadd.f32 %v1129, %v1130
        %1163 = vadd.xlane.f32.xlu0 %v1162
        %v1164 = vpop.xlane.xlu0 %1163
        %v1165 = vadd.f32 %v1131, %v1132
        %1166 = vadd.xlane.f32.xlu0 %v1165
        %v1167 = vpop.xlane.xlu0 %1166
        %v1168 = vadd.f32 %v1133, %v1134
        %1169 = vadd.xlane.f32.xlu0 %v1168
        %v1170 = vpop.xlane.xlu0 %1169
        %v1171 = vadd.f32 %v1135, %v1136
        %1172 = vadd.xlane.f32.xlu0 %v1171
        %v1173 = vpop.xlane.xlu0 %1172
        %v1174 = vadd.f32 %v1137, %v1138
        %1175 = vadd.xlane.f32.xlu0 %v1174
        %v1176 = vpop.xlane.xlu0 %1175
        %v1177 = vadd.f32 %v1139, %v1140
        %1178 = vadd.xlane.f32.xlu0 %v1177
        %v1179 = vpop.xlane.xlu0 %1178
        %v1180 = vadd.f32 %v1141, %v1142
        %1181 = vadd.xlane.f32.xlu0 %v1180
        %v1182 = vpop.xlane.xlu0 %1181
        %v1183 = vadd.f32 %v1143, %v1144
        %1184 = vadd.xlane.f32.xlu0 %v1183
        %v1185 = vpop.xlane.xlu0 %1184
        %v1186 = vadd.f32 %v1145, %v1146
        %1187 = vadd.xlane.f32.xlu0 %v1186
        %v1188 = vpop.xlane.xlu0 %1187
        %v1189 = vadd.f32 %v1147, %v1148
        %1190 = vadd.xlane.f32.xlu0 %v1189
        %v1191 = vpop.xlane.xlu0 %1190
        %v1192 = vadd.f32 %v1149, %v1150
        %1193 = vadd.xlane.f32.xlu0 %v1192
        %v1194 = vpop.xlane.xlu0 %1193
        %v1195 = vadd.f32 %v1151, %v1152
        %1196 = vadd.xlane.f32.xlu0 %v1195
        %v1197 = vpop.xlane.xlu0 %1196
        %v1198 = vadd.f32 %v1153, %v1154
        %1199 = vadd.xlane.f32.xlu0 %v1198
        %v1200 = vpop.xlane.xlu0 %1199
        %v1201 = vadd.f32 %v1155, %v1156
        %1202 = vadd.xlane.f32.xlu0 %v1201
        %v1203 = vpop.xlane.xlu0 %1202
        %v1204 = vadd.f32 %v1157, %v1158
        %1205 = vadd.xlane.f32.xlu0 %v1204
        %v1206 = vpop.xlane.xlu0 %1205
        %s1207 = sld [smem:[#allocation2]]
        %v1208 = vstv %s1207
        %v1209 = vadd.f32 %v1161, %v1208
        %v1210 = vadd.f32 %v1164, %v1208
        %v1211 = vadd.f32 %v1167, %v1208
        %v1212 = vadd.f32 %v1170, %v1208
        %v1213 = vadd.f32 %v1173, %v1208
        %v1214 = vadd.f32 %v1176, %v1208
        %v1215 = vadd.f32 %v1179, %v1208
        %v1216 = vadd.f32 %v1182, %v1208
        %v1217 = vadd.f32 %v1185, %v1208
        %v1218 = vadd.f32 %v1188, %v1208
        %v1219 = vadd.f32 %v1191, %v1208
        %v1220 = vadd.f32 %v1194, %v1208
        %v1221 = vadd.f32 %v1197, %v1208
        %v1222 = vadd.f32 %v1200, %v1208
        %v1223 = vadd.f32 %v1203, %v1208
        %v1224 = vadd.f32 %v1206, %v1208
        %v1225 = vxor.u32 %v1209, 2147483648
        %v1226 = vxor.u32 %v1210, 2147483648
        %v1227 = vxor.u32 %v1211, 2147483648
        %v1228 = vxor.u32 %v1212, 2147483648
        %v1229 = vxor.u32 %v1213, 2147483648
        %v1230 = vxor.u32 %v1214, 2147483648
        %v1231 = vxor.u32 %v1215, 2147483648
        %v1232 = vxor.u32 %v1216, 2147483648
        %v1233 = vxor.u32 %v1217, 2147483648
        %v1234 = vxor.u32 %v1218, 2147483648
        %v1235 = vxor.u32 %v1219, 2147483648
        %v1236 = vxor.u32 %v1220, 2147483648
        %v1237 = vxor.u32 %v1221, 2147483648
        %v1238 = vxor.u32 %v1222, 2147483648
        %v1239 = vxor.u32 %v1223, 2147483648
        %v1240 = vxor.u32 %v1224, 2147483648
        %v1241 = vmul.f32 %v1225, 1.442695
        %v1242 = vpow.pop %v1241
        %v1243 = vmul.f32 %v1226, 1.442695
        %v1244 = vpow.pop %v1243
        %v1245 = vmul.f32 %v1227, 1.442695
        %v1246 = vpow.pop %v1245
        %v1247 = vmul.f32 %v1228, 1.442695
        %v1248 = vpow.pop %v1247
        %v1249 = vmul.f32 %v1229, 1.442695
        %v1250 = vpow.pop %v1249
        %v1251 = vmul.f32 %v1230, 1.442695
        %v1252 = vpow.pop %v1251
        %v1253 = vmul.f32 %v1231, 1.442695
        %v1254 = vpow.pop %v1253
        %v1255 = vmul.f32 %v1232, 1.442695
        %v1256 = vpow.pop %v1255
        %v1257 = vmul.f32 %v1233, 1.442695
        %v1258 = vpow.pop %v1257
        %v1259 = vmul.f32 %v1234, 1.442695
        %v1260 = vpow.pop %v1259
        %v1261 = vmul.f32 %v1235, 1.442695
        %v1262 = vpow.pop %v1261
        %v1263 = vmul.f32 %v1236, 1.442695
        %v1264 = vpow.pop %v1263
        %v1265 = vmul.f32 %v1237, 1.442695
        %v1266 = vpow.pop %v1265
        %v1267 = vmul.f32 %v1238, 1.442695
        %v1268 = vpow.pop %v1267
        %v1269 = vmul.f32 %v1239, 1.442695
        %v1270 = vpow.pop %v1269
        %v1271 = vmul.f32 %v1240, 1.442695
        %v1272 = vpow.pop %v1271
        %v1273 = vadd.f32 %v1242, 1.0
        %v1274 = vadd.f32 %v1244, 1.0
        %v1275 = vadd.f32 %v1246, 1.0
        %v1276 = vadd.f32 %v1248, 1.0
        %v1277 = vadd.f32 %v1250, 1.0
        %v1278 = vadd.f32 %v1252, 1.0
        %v1279 = vadd.f32 %v1254, 1.0
        %v1280 = vadd.f32 %v1256, 1.0
        %v1281 = vadd.f32 %v1258, 1.0
        %v1282 = vadd.f32 %v1260, 1.0
        %v1283 = vadd.f32 %v1262, 1.0
        %v1284 = vadd.f32 %v1264, 1.0
        %v1285 = vadd.f32 %v1266, 1.0
        %v1286 = vadd.f32 %v1268, 1.0
        %v1287 = vadd.f32 %v1270, 1.0
        %v1288 = vadd.f32 %v1272, 1.0
        %v1289 = vrcp.pop %v1273
        %v1290 = vmul.f32 1.0, %v1289
        %v1291 = vrcp.pop %v1274
        %v1292 = vmul.f32 1.0, %v1291
        %v1293 = vrcp.pop %v1275
        %v1294 = vmul.f32 1.0, %v1293
        %v1295 = vrcp.pop %v1276
        %v1296 = vmul.f32 1.0, %v1295
        %v1297 = vrcp.pop %v1277
        %v1298 = vmul.f32 1.0, %v1297
        %v1299 = vrcp.pop %v1278
        %v1300 = vmul.f32 1.0, %v1299
        %v1301 = vrcp.pop %v1279
        %v1302 = vmul.f32 1.0, %v1301
        %v1303 = vrcp.pop %v1280
        %v1304 = vmul.f32 1.0, %v1303
        %v1305 = vrcp.pop %v1281
        %v1306 = vmul.f32 1.0, %v1305
        %v1307 = vrcp.pop %v1282
        %v1308 = vmul.f32 1.0, %v1307
        %v1309 = vrcp.pop %v1283
        %v1310 = vmul.f32 1.0, %v1309
        %v1311 = vrcp.pop %v1284
        %v1312 = vmul.f32 1.0, %v1311
        %v1313 = vrcp.pop %v1285
        %v1314 = vmul.f32 1.0, %v1313
        %v1315 = vrcp.pop %v1286
        %v1316 = vmul.f32 1.0, %v1315
        %v1317 = vrcp.pop %v1287
        %v1318 = vmul.f32 1.0, %v1317
        %v1319 = vrcp.pop %v1288
        %v1320 = vmul.f32 1.0, %v1319
        %vm1321 = vcmask 7168
        %1322 = vst.msk [vmem:[%s330] sm:$0xff] %vm1321, %v1290
        %1323 = vst.msk [vmem:[%s330 + $0x8] sm:$0xff] %vm1321, %v1292
        %1324 = vst.msk [vmem:[%s330 + $0x10] sm:$0xff] %vm1321, %v1294
        %1325 = vst.msk [vmem:[%s330 + $0x18] sm:$0xff] %vm1321, %v1296
        %1326 = vst.msk [vmem:[%s330 + $0x20] sm:$0xff] %vm1321, %v1298
        %1327 = vst.msk [vmem:[%s330 + $0x28] sm:$0xff] %vm1321, %v1300
        %1328 = vst.msk [vmem:[%s330 + $0x30] sm:$0xff] %vm1321, %v1302
        %1329 = vst.msk [vmem:[%s330 + $0x38] sm:$0xff] %vm1321, %v1304
        %1330 = vst.msk [vmem:[%s330 + $0x40] sm:$0xff] %vm1321, %v1306
        %1331 = vst.msk [vmem:[%s330 + $0x48] sm:$0xff] %vm1321, %v1308
        %1332 = vst.msk [vmem:[%s330 + $0x50] sm:$0xff] %vm1321, %v1310
        %1333 = vst.msk [vmem:[%s330 + $0x58] sm:$0xff] %vm1321, %v1312
        %1334 = vst.msk [vmem:[%s330 + $0x60] sm:$0xff] %vm1321, %v1314
        %1335 = vst.msk [vmem:[%s330 + $0x68] sm:$0xff] %vm1321, %v1316
        %1336 = vst.msk [vmem:[%s330 + $0x70] sm:$0xff] %vm1321, %v1318
        %1337 = vst.msk [vmem:[%s330 + $0x78] sm:$0xff] %vm1321, %v1320
        %s1338 = smul.u32 16, %s24
        %p1339 = scmp.lt.s32.totalorder %s1338, 63
        %s1340 = scalar_select %p1339, %s1338, 63
        %s1341 = smul.addr %s1340, 8
        %s1342 = scalar_lea.vmem %s6, %s1341
        // Predicated region
        $region57: #{tpu_custom_call.1} parent=43 // pred_check
          %p1343 = pneg %p178
        $region58: #{tpu_custom_call.1} parent=43 // pred_check_branch
          %1345 = sbr.rel (%p1343) target = $region60
        $region59: #{tpu_custom_call.1} parent=43 // pred_region
          %s1346 = smul.u32 16, %s24
        $region60: #{tpu_custom_call.1} parent=43 // pred_fallthru
          _
      $region44: #{tpu_custom_call.1} parent=5 // pred_fallthru
        _
      %p1347 = scmp.le.s32.totalorder 2, %s19
      // Predicated region
      $region61: #{tpu_custom_call.1} parent=5 // pred_check
        %p1348 = pneg %p1347
      $region62: #{tpu_custom_call.1} parent=5 // pred_check_branch
        %1350 = sbr.rel (%p1348) target = $region64
      $region63: #{tpu_custom_call.1} parent=5 // pred_region
        %s1351 = ssub.s32 %s19, 2
        // Predicated region
        $region65: #{tpu_custom_call.1} parent=63 // pred_check
          %p1352 = pneg %p184
        $region66: #{tpu_custom_call.1} parent=63 // pred_check_branch
          %1354 = sbr.rel (%p1352) target = $region68
        $region67: #{tpu_custom_call.1} parent=63 // pred_region
          %s1355 = smul.u32 16, %s25
          %p1356 = scmp.lt.s32.totalorder %s1355, 63
          %s1357 = scalar_select %p1356, %s1355, 63
          %s1358 = smul.addr %s1357, 8
          %s1359 = scalar_lea.vmem %s6, %s1358
        $region68: #{tpu_custom_call.1} parent=63 // pred_fallthru
          _
      $region64: #{tpu_custom_call.1} parent=5 // pred_fallthru
        _
    $region6: #{tpu_custom_call.1} parent=1 // loop_footer
      %s23 = sadd.s32 1, %s19
    $region7: #{tpu_custom_call.1} parent=1 // loop_footer_branch
      %18 = sbr.rel target = $region3
    $region8: #{tpu_custom_call.1} parent=1 // loop_exit
      _
    %1360 = vsyncpa [#allocation4], 1
    %s1361 = scalar_lea.sflag [#allocation4], 1
    %1362 = vsyncpa %s1361, 1
    %1363 = vsyncpa [#allocation6], 1
    %s1364 = scalar_lea.sflag [#allocation6], 1
    %1365 = vsyncpa %s1364, 1

</llo_original>
